<compile_context>
chip_gen: v6e
topology: v6e:2x2x1
jax: 0.10.0
libtpu: 0.0.40
codegen_flags: <defaults>
</compile_context>

<pallas_src>
import math
import jax
import jax.numpy as jnp
from jax import lax
from jax.experimental import pallas as pl
from jax.experimental.pallas import tpu as pltpu

_INV_SQRT2 = 1.0 / math.sqrt(2.0)
_LANE = 128


def _gelu_exact(x):
    # PyTorch nn.GELU() default is the exact erf-based GELU (f32 on the VPU).
    return 0.5 * x * (1.0 + lax.erf(x * _INV_SQRT2))


# --------------------------------------------------------------------------- #
# Kernel
# --------------------------------------------------------------------------- #
def realnvp_kernel(x_ref, w1_ref, b1_ref, w2_ref, b2_ref, w3_ref, b3_ref, z_ref):
    half = x_ref.shape[1] // 2

    x = x_ref[...].astype(jnp.float32)
    lower = x[:, :half]
    upper = x[:, half:]

    def coupling(c, v):
        """Fused [t|s] FCNN pair c applied to v: 3 MXU matmuls, f32 accum."""
        vb = v.astype(w1_ref.dtype)                                  # bf16 for MXU
        h = jnp.dot(vb, w1_ref[c], preferred_element_type=jnp.float32) + b1_ref[c]
        h = _gelu_exact(h).astype(w2_ref.dtype)
        h = jnp.dot(h, w2_ref[c], preferred_element_type=jnp.float32) + b2_ref[c]
        h = _gelu_exact(h).astype(w3_ref.dtype)
        ts = jnp.dot(h, w3_ref[c], preferred_element_type=jnp.float32) + b3_ref[c]
        return ts[:, :half], ts[:, half:]                            # (t, s)

    t1, s1 = coupling(0, lower)
    upper = t1 + upper * jnp.exp(s1)

    t2, s2 = coupling(1, upper)
    lower = t2 + lower * jnp.exp(s2)

    # Single lane-dense store of the full (TILE_B, dim) result.
    z_ref[...] = jnp.concatenate([lower, upper], axis=1).astype(z_ref.dtype)


# --------------------------------------------------------------------------- #
# Wrapper
# --------------------------------------------------------------------------- #
def realnvp_forward(x, fparams, *, tile_b=256):
    """x: (B, dim) float32.  fparams: fused/padded weights from fuse_params()."""
    B, dim = x.shape
    tile_b = min(tile_b, B)
    grid = (pl.cdiv(B, tile_b),)

    def resident(arr):
        # Full-array block, block index constant across the grid -> stays in
        # VMEM for the whole kernel (no re-DMA per batch tile).
        shape = arr.shape
        return pl.BlockSpec(shape, lambda i: (0,) * len(shape))

    in_specs = [
        pl.BlockSpec((tile_b, dim), lambda i: (i, 0)),               # x tile
        resident(fparams["w1"]), resident(fparams["b1"]),
        resident(fparams["w2"]), resident(fparams["b2"]),
        resident(fparams["w3"]), resident(fparams["b3"]),
    ]
    out_specs = pl.BlockSpec((tile_b, dim), lambda i: (i, 0))

    return pl.pallas_call(
        realnvp_kernel,
        out_shape=jax.ShapeDtypeStruct((B, dim), x.dtype),
        grid_spec=pltpu.PrefetchScalarGridSpec(
            num_scalar_prefetch=0,
            grid=grid,
            in_specs=in_specs,
            out_specs=out_specs,
        ),
        compiler_params=pltpu.CompilerParams(
            dimension_semantics=("parallel",),      # 2x on v7x (2 TCs); no-op v5e/v6e
            vmem_limit_bytes=32 * 1024 * 1024,      # > v5e 16MiB default, < v7x 64MiB
        ),
    )(x, fparams["w1"], fparams["b1"], fparams["w2"], fparams["b2"],
      fparams["w3"], fparams["b3"])


# --------------------------------------------------------------------------- #
# Parameters
# --------------------------------------------------------------------------- #
def init_params(key, dim, hidden_dim):
    """PyTorch-Linear-like init (uniform +-1/sqrt(fan_in)).
    Unfused layout: weights (4, in, out), biases (4, 1, out);
    nets ordered 0=t1, 1=s1, 2=t2, 3=s2."""
    half = dim // 2
    ks = jax.random.split(key, 24)

    def u(k, shape, fan_in):
        bound = 1.0 / math.sqrt(fan_in)
        return jax.random.uniform(k, shape, jnp.float32, -bound, bound)

    w1 = jnp.stack([u(ks[i], (half, hidden_dim), half) for i in range(4)])
    b1 = jnp.stack([u(ks[4 + i], (1, hidden_dim), half) for i in range(4)])
    w2 = jnp.stack([u(ks[8 + i], (hidden_dim, hidden_dim), hidden_dim) for i in range(4)])
    b2 = jnp.stack([u(ks[12 + i], (1, hidden_dim), hidden_dim) for i in range(4)])
    w3 = jnp.stack([u(ks[16 + i], (hidden_dim, half), hidden_dim) for i in range(4)])
    b3 = jnp.stack([u(ks[20 + i], (1, half), hidden_dim) for i in range(4)])
    return {"w1": w1, "b1": b1, "w2": w2, "b2": b2, "w3": w3, "b3": b3}


def fuse_params(params, lane=_LANE):
    """Fuse each (t, s) net pair into one [t|s] FCNN with the hidden width
    zero-padded to a multiple of `lane`.  Exact: GELU(0)=0 and the padded /
    off-diagonal weight blocks are zero.  Weights are stored bf16 for the MXU;
    biases stay f32 (added to the f32 accumulator)."""
    half = params["w1"].shape[1]
    hidden = params["w1"].shape[2]
    hp = ((2 * hidden + lane - 1) // lane) * lane   # padded fused hidden width

    def pair(c):
        ti, si = 2 * c, 2 * c + 1
        fw1 = jnp.zeros((half, hp), jnp.float32)
        fw1 = fw1.at[:, :hidden].set(params["w1"][ti])
        fw1 = fw1.at[:, hidden:2 * hidden].set(params["w1"][si])
        fb1 = jnp.zeros((1, hp), jnp.float32)
        fb1 = fb1.at[:, :hidden].set(params["b1"][ti])
        fb1 = fb1.at[:, hidden:2 * hidden].set(params["b1"][si])

        fw2 = jnp.zeros((hp, hp), jnp.float32)                      # block-diagonal
        fw2 = fw2.at[:hidden, :hidden].set(params["w2"][ti])
        fw2 = fw2.at[hidden:2 * hidden, hidden:2 * hidden].set(params["w2"][si])
        fb2 = jnp.zeros((1, hp), jnp.float32)
        fb2 = fb2.at[:, :hidden].set(params["b2"][ti])
        fb2 = fb2.at[:, hidden:2 * hidden].set(params["b2"][si])

        fw3 = jnp.zeros((hp, 2 * half), jnp.float32)                # block-diagonal
        fw3 = fw3.at[:hidden, :half].set(params["w3"][ti])
        fw3 = fw3.at[hidden:2 * hidden, half:].set(params["w3"][si])
        fb3 = jnp.concatenate([params["b3"][ti], params["b3"][si]], axis=-1)
        return fw1, fb1, fw2, fb2, fw3, fb3

    p0, p1 = pair(0), pair(1)
    fw1, fb1, fw2, fb2, fw3, fb3 = (jnp.stack([a, b]) for a, b in zip(p0, p1))
    return {
        "w1": fw1.astype(jnp.bfloat16), "b1": fb1,
        "w2": fw2.astype(jnp.bfloat16), "b2": fb2,
        "w3": fw3.astype(jnp.bfloat16), "b3": fb3,
    }


# --------------------------------------------------------------------------- #
# Pure-JAX reference (unfused, matches the PyTorch module)
# --------------------------------------------------------------------------- #
def realnvp_reference(x, params, matmul_dtype=jnp.float32):
    """matmul_dtype=float32 reproduces PyTorch-f32 semantics; bfloat16 mirrors
    the kernel's bf16-operand / f32-accumulate MXU path."""
    dim = x.shape[1]
    half = dim // 2

    def lin(v, w, b):
        return jnp.dot(v.astype(matmul_dtype), w.astype(matmul_dtype),
                       preferred_element_type=jnp.float32) + b

    def fcnn(i, v):
        h = _gelu_exact(lin(v, params["w1"][i], params["b1"][i]))
        h = _gelu_exact(lin(h, params["w2"][i], params["b2"][i]))
        return lin(h, params["w3"][i], params["b3"][i])

    lower = x[:, :half].astype(jnp.float32)
    upper = x[:, half:].astype(jnp.float32)
    upper = fcnn(0, lower) + upper * jnp.exp(fcnn(1, lower))
    lower = fcnn(2, upper) + lower * jnp.exp(fcnn(3, upper))
    return jnp.concatenate([lower, upper], axis=1)


# TODO(synk): RealNVP.inverse() is not implemented (only the forward pass was
# requested); it would be a second kernel mirroring this one with -s / -t.

if __name__ == "__main__":
    B, DIM, HIDDEN, TILE_B = 512, 16, 32, 256   # grid of 2 batch tiles
    key = jax.random.PRNGKey(0)
    kx, kp = jax.random.split(key)

    x = jax.random.normal(kx, (B, DIM), dtype=jnp.float32)
    params = init_params(kp, DIM, HIDDEN)
    fused = fuse_params(params)

    z = realnvp_forward(x, fused, tile_b=TILE_B)
    jax.block_until_ready(z)

    # Apples-to-apples check: the reference quantizes matmul operands to bf16
    # exactly like the kernel (f32 accumulation).  Versus a pure-f32 model the
    # bf16 MXU path is within ~1e-2 relative -- the deliberate perf trade.
    z_ref = realnvp_reference(x, params, matmul_dtype=jnp.bfloat16)
    assert z.shape == (B, DIM)
    assert jnp.allclose(z, z_ref, atol=1e-2, rtol=1e-2), (
        "mismatch vs reference, max abs err = "
        f"{float(jnp.max(jnp.abs(z - z_ref)))}")

    print("KERNEL_OK")
</pallas_src>

<mosaic_0001>
module attributes {stable_mosaic.version = 11 : i64} {
  func.func @realnvp_kernel(%arg0: i32, %arg1: memref<256x16xf32, #tpu.memory_space<vmem>>, %arg2: memref<2x8x128xbf16, #tpu.memory_space<vmem>>, %arg3: memref<2x1x128xf32, #tpu.memory_space<vmem>>, %arg4: memref<2x128x128xbf16, #tpu.memory_space<vmem>>, %arg5: memref<2x1x128xf32, #tpu.memory_space<vmem>>, %arg6: memref<2x128x16xbf16, #tpu.memory_space<vmem>>, %arg7: memref<2x1x16xf32, #tpu.memory_space<vmem>>, %arg8: memref<256x16xf32, #tpu.memory_space<vmem>>) attributes {dimension_semantics = [#tpu.dimension_semantics<parallel>], iteration_bounds = array<i64: 2>, scalar_prefetch = 0 : i64, scratch_operands = 0 : i64, tpu.core_type = #tpu.core_type<tc>, window_params = [{transform_indices = @transform_0, window_bounds = array<i64: 256, 16>}, {pipeline_mode = #tpu.pipeline_mode<synchronous>, transform_indices = @transform_1, window_bounds = array<i64: 2, 8, 128>}, {pipeline_mode = #tpu.pipeline_mode<synchronous>, transform_indices = @transform_2, window_bounds = array<i64: 2, 1, 128>}, {pipeline_mode = #tpu.pipeline_mode<synchronous>, transform_indices = @transform_3, window_bounds = array<i64: 2, 128, 128>}, {pipeline_mode = #tpu.pipeline_mode<synchronous>, transform_indices = @transform_4, window_bounds = array<i64: 2, 1, 128>}, {pipeline_mode = #tpu.pipeline_mode<synchronous>, transform_indices = @transform_5, window_bounds = array<i64: 2, 128, 16>}, {pipeline_mode = #tpu.pipeline_mode<synchronous>, transform_indices = @transform_6, window_bounds = array<i64: 2, 1, 16>}, {transform_indices = @transform_7, window_bounds = array<i64: 256, 16>}]} {
    %c0 = arith.constant 0 : index
    %c0_0 = arith.constant 0 : index
    %0 = vector.load %arg1[%c0, %c0_0] : memref<256x16xf32, #tpu.memory_space<vmem>>, vector<256x16xf32>
    %1 = vector.extract_strided_slice %0 {offsets = [0, 0], sizes = [256, 8], strides = [1, 1]} : vector<256x16xf32> to vector<256x8xf32>
    %2 = vector.extract_strided_slice %0 {offsets = [0, 8], sizes = [256, 8], strides = [1, 1]} : vector<256x16xf32> to vector<256x8xf32>
    %3 = arith.truncf %1 : vector<256x8xf32> to vector<256x8xbf16>
    %c0_1 = arith.constant 0 : index
    %c0_2 = arith.constant 0 : index
    %c0_3 = arith.constant 0 : index
    %4 = vector.load %arg2[%c0_1, %c0_2, %c0_3] : memref<2x8x128xbf16, #tpu.memory_space<vmem>>, vector<1x8x128xbf16>
    %5 = vector.shape_cast %4 : vector<1x8x128xbf16> to vector<8x128xbf16>
    %cst = arith.constant dense<0.000000e+00> : vector<256x128xf32>
    %6 = tpu.matmul %3, %5, %cst {dimension_numbers = #tpu.dot_dimension_numbers<[1], [0], [0], [1], [0, 0, 1, 1], [], []>} : vector<256x8xbf16>, vector<8x128xbf16>, vector<256x128xf32> -> vector<256x128xf32>
    %c0_4 = arith.constant 0 : index
    %c0_5 = arith.constant 0 : index
    %c0_6 = arith.constant 0 : index
    %7 = vector.load %arg3[%c0_4, %c0_5, %c0_6] : memref<2x1x128xf32, #tpu.memory_space<vmem>>, vector<1x1x128xf32>
    %8 = vector.shape_cast %7 : vector<1x1x128xf32> to vector<1x128xf32>
    %9 = vector.broadcast %8 : vector<1x128xf32> to vector<256x128xf32>
    %10 = arith.addf %6, %9 : vector<256x128xf32>
    %cst_7 = arith.constant 5.000000e-01 : f32
    %11 = vector.broadcast %cst_7 : f32 to vector<256x128xf32>
    %12 = arith.mulf %11, %10 : vector<256x128xf32>
    %cst_8 = arith.constant 0.707106769 : f32
    %13 = vector.broadcast %cst_8 : f32 to vector<256x128xf32>
    %14 = arith.mulf %10, %13 : vector<256x128xf32>
    %15 = math.erf %14 : vector<256x128xf32>
    %cst_9 = arith.constant 1.000000e+00 : f32
    %16 = vector.broadcast %cst_9 : f32 to vector<256x128xf32>
    %17 = arith.addf %16, %15 : vector<256x128xf32>
    %18 = arith.mulf %12, %17 : vector<256x128xf32>
    %19 = arith.truncf %18 : vector<256x128xf32> to vector<256x128xbf16>
    %c0_10 = arith.constant 0 : index
    %c0_11 = arith.constant 0 : index
    %c0_12 = arith.constant 0 : index
    %20 = vector.load %arg4[%c0_10, %c0_11, %c0_12] : memref<2x128x128xbf16, #tpu.memory_space<vmem>>, vector<1x128x128xbf16>
    %21 = vector.shape_cast %20 : vector<1x128x128xbf16> to vector<128x128xbf16>
    %cst_13 = arith.constant dense<0.000000e+00> : vector<256x128xf32>
    %22 = tpu.matmul %19, %21, %cst_13 {dimension_numbers = #tpu.dot_dimension_numbers<[1], [0], [0], [1], [0, 0, 1, 1], [], []>} : vector<256x128xbf16>, vector<128x128xbf16>, vector<256x128xf32> -> vector<256x128xf32>
    %c0_14 = arith.constant 0 : index
    %c0_15 = arith.constant 0 : index
    %c0_16 = arith.constant 0 : index
    %23 = vector.load %arg5[%c0_14, %c0_15, %c0_16] : memref<2x1x128xf32, #tpu.memory_space<vmem>>, vector<1x1x128xf32>
    %24 = vector.shape_cast %23 : vector<1x1x128xf32> to vector<1x128xf32>
    %25 = vector.broadcast %24 : vector<1x128xf32> to vector<256x128xf32>
    %26 = arith.addf %22, %25 : vector<256x128xf32>
    %cst_17 = arith.constant 5.000000e-01 : f32
    %27 = vector.broadcast %cst_17 : f32 to vector<256x128xf32>
    %28 = arith.mulf %27, %26 : vector<256x128xf32>
    %cst_18 = arith.constant 0.707106769 : f32
    %29 = vector.broadcast %cst_18 : f32 to vector<256x128xf32>
    %30 = arith.mulf %26, %29 : vector<256x128xf32>
    %31 = math.erf %30 : vector<256x128xf32>
    %cst_19 = arith.constant 1.000000e+00 : f32
    %32 = vector.broadcast %cst_19 : f32 to vector<256x128xf32>
    %33 = arith.addf %32, %31 : vector<256x128xf32>
    %34 = arith.mulf %28, %33 : vector<256x128xf32>
    %35 = arith.truncf %34 : vector<256x128xf32> to vector<256x128xbf16>
    %c0_20 = arith.constant 0 : index
    %c0_21 = arith.constant 0 : index
    %c0_22 = arith.constant 0 : index
    %36 = vector.load %arg6[%c0_20, %c0_21, %c0_22] : memref<2x128x16xbf16, #tpu.memory_space<vmem>>, vector<1x128x16xbf16>
    %37 = vector.shape_cast %36 : vector<1x128x16xbf16> to vector<128x16xbf16>
    %cst_23 = arith.constant dense<0.000000e+00> : vector<256x16xf32>
    %38 = tpu.matmul %35, %37, %cst_23 {dimension_numbers = #tpu.dot_dimension_numbers<[1], [0], [0], [1], [0, 0, 1, 1], [], []>} : vector<256x128xbf16>, vector<128x16xbf16>, vector<256x16xf32> -> vector<256x16xf32>
    %c0_24 = arith.constant 0 : index
    %c0_25 = arith.constant 0 : index
    %c0_26 = arith.constant 0 : index
    %39 = vector.load %arg7[%c0_24, %c0_25, %c0_26] : memref<2x1x16xf32, #tpu.memory_space<vmem>>, vector<1x1x16xf32>
    %40 = vector.shape_cast %39 : vector<1x1x16xf32> to vector<1x16xf32>
    %41 = vector.broadcast %40 : vector<1x16xf32> to vector<256x16xf32>
    %42 = arith.addf %38, %41 : vector<256x16xf32>
    %43 = vector.extract_strided_slice %42 {offsets = [0, 0], sizes = [256, 8], strides = [1, 1]} : vector<256x16xf32> to vector<256x8xf32>
    %44 = vector.extract_strided_slice %42 {offsets = [0, 8], sizes = [256, 8], strides = [1, 1]} : vector<256x16xf32> to vector<256x8xf32>
    %45 = math.exp %44 : vector<256x8xf32>
    %46 = arith.mulf %2, %45 : vector<256x8xf32>
    %47 = arith.addf %43, %46 : vector<256x8xf32>
    %48 = arith.truncf %47 : vector<256x8xf32> to vector<256x8xbf16>
    %c1 = arith.constant 1 : index
    %c0_27 = arith.constant 0 : index
    %c0_28 = arith.constant 0 : index
    %49 = vector.load %arg2[%c1, %c0_27, %c0_28] : memref<2x8x128xbf16, #tpu.memory_space<vmem>>, vector<1x8x128xbf16>
    %50 = vector.shape_cast %49 : vector<1x8x128xbf16> to vector<8x128xbf16>
    %cst_29 = arith.constant dense<0.000000e+00> : vector<256x128xf32>
    %51 = tpu.matmul %48, %50, %cst_29 {dimension_numbers = #tpu.dot_dimension_numbers<[1], [0], [0], [1], [0, 0, 1, 1], [], []>} : vector<256x8xbf16>, vector<8x128xbf16>, vector<256x128xf32> -> vector<256x128xf32>
    %c1_30 = arith.constant 1 : index
    %c0_31 = arith.constant 0 : index
    %c0_32 = arith.constant 0 : index
    %52 = vector.load %arg3[%c1_30, %c0_31, %c0_32] : memref<2x1x128xf32, #tpu.memory_space<vmem>>, vector<1x1x128xf32>
    %53 = vector.shape_cast %52 : vector<1x1x128xf32> to vector<1x128xf32>
    %54 = vector.broadcast %53 : vector<1x128xf32> to vector<256x128xf32>
    %55 = arith.addf %51, %54 : vector<256x128xf32>
    %cst_33 = arith.constant 5.000000e-01 : f32
    %56 = vector.broadcast %cst_33 : f32 to vector<256x128xf32>
    %57 = arith.mulf %56, %55 : vector<256x128xf32>
    %cst_34 = arith.constant 0.707106769 : f32
    %58 = vector.broadcast %cst_34 : f32 to vector<256x128xf32>
    %59 = arith.mulf %55, %58 : vector<256x128xf32>
    %60 = math.erf %59 : vector<256x128xf32>
    %cst_35 = arith.constant 1.000000e+00 : f32
    %61 = vector.broadcast %cst_35 : f32 to vector<256x128xf32>
    %62 = arith.addf %61, %60 : vector<256x128xf32>
    %63 = arith.mulf %57, %62 : vector<256x128xf32>
    %64 = arith.truncf %63 : vector<256x128xf32> to vector<256x128xbf16>
    %c1_36 = arith.constant 1 : index
    %c0_37 = arith.constant 0 : index
    %c0_38 = arith.constant 0 : index
    %65 = vector.load %arg4[%c1_36, %c0_37, %c0_38] : memref<2x128x128xbf16, #tpu.memory_space<vmem>>, vector<1x128x128xbf16>
    %66 = vector.shape_cast %65 : vector<1x128x128xbf16> to vector<128x128xbf16>
    %cst_39 = arith.constant dense<0.000000e+00> : vector<256x128xf32>
    %67 = tpu.matmul %64, %66, %cst_39 {dimension_numbers = #tpu.dot_dimension_numbers<[1], [0], [0], [1], [0, 0, 1, 1], [], []>} : vector<256x128xbf16>, vector<128x128xbf16>, vector<256x128xf32> -> vector<256x128xf32>
    %c1_40 = arith.constant 1 : index
    %c0_41 = arith.constant 0 : index
    %c0_42 = arith.constant 0 : index
    %68 = vector.load %arg5[%c1_40, %c0_41, %c0_42] : memref<2x1x128xf32, #tpu.memory_space<vmem>>, vector<1x1x128xf32>
    %69 = vector.shape_cast %68 : vector<1x1x128xf32> to vector<1x128xf32>
    %70 = vector.broadcast %69 : vector<1x128xf32> to vector<256x128xf32>
    %71 = arith.addf %67, %70 : vector<256x128xf32>
    %cst_43 = arith.constant 5.000000e-01 : f32
    %72 = vector.broadcast %cst_43 : f32 to vector<256x128xf32>
    %73 = arith.mulf %72, %71 : vector<256x128xf32>
    %cst_44 = arith.constant 0.707106769 : f32
    %74 = vector.broadcast %cst_44 : f32 to vector<256x128xf32>
    %75 = arith.mulf %71, %74 : vector<256x128xf32>
    %76 = math.erf %75 : vector<256x128xf32>
    %cst_45 = arith.constant 1.000000e+00 : f32
    %77 = vector.broadcast %cst_45 : f32 to vector<256x128xf32>
    %78 = arith.addf %77, %76 : vector<256x128xf32>
    %79 = arith.mulf %73, %78 : vector<256x128xf32>
    %80 = arith.truncf %79 : vector<256x128xf32> to vector<256x128xbf16>
    %c1_46 = arith.constant 1 : index
    %c0_47 = arith.constant 0 : index
    %c0_48 = arith.constant 0 : index
    %81 = vector.load %arg6[%c1_46, %c0_47, %c0_48] : memref<2x128x16xbf16, #tpu.memory_space<vmem>>, vector<1x128x16xbf16>
    %82 = vector.shape_cast %81 : vector<1x128x16xbf16> to vector<128x16xbf16>
    %cst_49 = arith.constant dense<0.000000e+00> : vector<256x16xf32>
    %83 = tpu.matmul %80, %82, %cst_49 {dimension_numbers = #tpu.dot_dimension_numbers<[1], [0], [0], [1], [0, 0, 1, 1], [], []>} : vector<256x128xbf16>, vector<128x16xbf16>, vector<256x16xf32> -> vector<256x16xf32>
    %c1_50 = arith.constant 1 : index
    %c0_51 = arith.constant 0 : index
    %c0_52 = arith.constant 0 : index
    %84 = vector.load %arg7[%c1_50, %c0_51, %c0_52] : memref<2x1x16xf32, #tpu.memory_space<vmem>>, vector<1x1x16xf32>
    %85 = vector.shape_cast %84 : vector<1x1x16xf32> to vector<1x16xf32>
    %86 = vector.broadcast %85 : vector<1x16xf32> to vector<256x16xf32>
    %87 = arith.addf %83, %86 : vector<256x16xf32>
    %88 = vector.extract_strided_slice %87 {offsets = [0, 0], sizes = [256, 8], strides = [1, 1]} : vector<256x16xf32> to vector<256x8xf32>
    %89 = vector.extract_strided_slice %87 {offsets = [0, 8], sizes = [256, 8], strides = [1, 1]} : vector<256x16xf32> to vector<256x8xf32>
    %90 = math.exp %89 : vector<256x8xf32>
    %91 = arith.mulf %1, %90 : vector<256x8xf32>
    %92 = arith.addf %88, %91 : vector<256x8xf32>
    %93 = tpu.concatenate %92, %47 in 1 : vector<256x8xf32>, vector<256x8xf32> -> vector<256x16xf32>
    %c0_53 = arith.constant 0 : index
    %c0_54 = arith.constant 0 : index
    %94 = vector.load %arg8[%c0_53, %c0_54] : memref<256x16xf32, #tpu.memory_space<vmem>>, vector<256x16xf32>
    tpu.vector_store %arg8[%c0_53, %c0_54], %93 {strides = array<i32>} : memref<256x16xf32, #tpu.memory_space<vmem>>, vector<256x16xf32>,
    return
  }
  func.func @transform_0(%arg0: i32) -> (i32, i32) {
    %c0_i32 = arith.constant 0 : i32
    %c0_i32_0 = arith.constant 0 : i32
    return %arg0, %c0_i32 : i32, i32
  }
  func.func @transform_1(%arg0: i32) -> (i32, i32, i32) {
    %c0_i32 = arith.constant 0 : i32
    %c0_i32_0 = arith.constant 0 : i32
    %c0_i32_1 = arith.constant 0 : i32
    %c0_i32_2 = arith.constant 0 : i32
    return %c0_i32, %c0_i32_0, %c0_i32_1 : i32, i32, i32
  }
  func.func @transform_2(%arg0: i32) -> (i32, i32, i32) {
    %c0_i32 = arith.constant 0 : i32
    %c0_i32_0 = arith.constant 0 : i32
    %c0_i32_1 = arith.constant 0 : i32
    %c0_i32_2 = arith.constant 0 : i32
    return %c0_i32, %c0_i32_0, %c0_i32_1 : i32, i32, i32
  }
  func.func @transform_3(%arg0: i32) -> (i32, i32, i32) {
    %c0_i32 = arith.constant 0 : i32
    %c0_i32_0 = arith.constant 0 : i32
    %c0_i32_1 = arith.constant 0 : i32
    %c0_i32_2 = arith.constant 0 : i32
    return %c0_i32, %c0_i32_0, %c0_i32_1 : i32, i32, i32
  }
  func.func @transform_4(%arg0: i32) -> (i32, i32, i32) {
    %c0_i32 = arith.constant 0 : i32
    %c0_i32_0 = arith.constant 0 : i32
    %c0_i32_1 = arith.constant 0 : i32
    %c0_i32_2 = arith.constant 0 : i32
    return %c0_i32, %c0_i32_0, %c0_i32_1 : i32, i32, i32
  }
  func.func @transform_5(%arg0: i32) -> (i32, i32, i32) {
    %c0_i32 = arith.constant 0 : i32
    %c0_i32_0 = arith.constant 0 : i32
    %c0_i32_1 = arith.constant 0 : i32
    %c0_i32_2 = arith.constant 0 : i32
    return %c0_i32, %c0_i32_0, %c0_i32_1 : i32, i32, i32
  }
  func.func @transform_6(%arg0: i32) -> (i32, i32, i32) {
    %c0_i32 = arith.constant 0 : i32
    %c0_i32_0 = arith.constant 0 : i32
    %c0_i32_1 = arith.constant 0 : i32
    %c0_i32_2 = arith.constant 0 : i32
    return %c0_i32, %c0_i32_0, %c0_i32_1 : i32, i32, i32
  }
  func.func @transform_7(%arg0: i32) -> (i32, i32) {
    %c0_i32 = arith.constant 0 : i32
    %c0_i32_0 = arith.constant 0 : i32
    return %arg0, %c0_i32 : i32, i32
  }
}

</mosaic_0001>

<llo_original>
// kernel: tpu_custom_call.1
$region0: #{tpu_custom_call.1}
  #allocation0 [shape = 'u32[]', space=smem, size = 0x4, offset = 0x4, fixed_abs, tag = 'smem constant byte address 0x4 - core index']
  #allocation1 [shape = 'u32[144,128]{1,0:T(1,128)}', space=vmem, size = 0x12000, scoped, tag = 'internal scratch']
  %s0 = inlined_call_operand.vmem [shape: f32[512,16], index: 0, kind: input, shape index: {}]
  %s1 = inlined_call_operand.vmem [shape: bf16[2,8,128], index: 1, kind: input, shape index: {}]
  %s2 = inlined_call_operand.vmem [shape: f32[2,1,128], index: 2, kind: input, shape index: {}]
  %s3 = inlined_call_operand.vmem [shape: bf16[2,128,128], index: 3, kind: input, shape index: {}]
  %s4 = inlined_call_operand.vmem [shape: f32[2,1,128], index: 4, kind: input, shape index: {}]
  %s5 = inlined_call_operand.vmem [shape: bf16[2,128,16], index: 5, kind: input, shape index: {}]
  %s6 = inlined_call_operand.vmem [shape: f32[2,1,16], index: 6, kind: input, shape index: {}]
  %s7 = inlined_call_operand.vmem [shape: f32[512,16], index: 7, kind: output, shape index: {}]
  %s8 = sld [smem:[#allocation0]]
  $region61: #{tpu_custom_call.1} parent=0
    _
  %s10 = ssub.s32 1, %s8
  %s11 = scalar_select 0, %s10, %s8
  loop: start=0, step=1, limit=4
  $region2: #{tpu_custom_call.1} parent=0 // loop_pre_header
    _
  $region3: #{tpu_custom_call.1} parent=0 // loop_header
    %s13 = sphi 0, %s17
    %p14 = scmp.ge.s32.totalorder %s13, 4
    %s23 = sphi 0, %s25
    %s26 = sphi 0, %s23
    %s27 = sphi 0, %s26
    %s43 = sphi 0, %s27
    %s47 = sphi 0, %s47
    %s49 = sphi 0, %s47
    %s50 = sphi 0, %s49
    %s64 = sphi 0, %s50
    %s68 = sphi 0, %s68
    %s70 = sphi 0, %s68
    %s71 = sphi 0, %s70
    %s85 = sphi 0, %s71
    %s89 = sphi 0, %s89
    %s91 = sphi 0, %s89
    %s92 = sphi 0, %s91
    %s106 = sphi 0, %s92
    %s110 = sphi 0, %s110
    %s112 = sphi 0, %s110
    %s113 = sphi 0, %s112
    %s127 = sphi 0, %s113
    %s131 = sphi 0, %s131
    %s133 = sphi 0, %s131
    %s134 = sphi 0, %s133
    %s148 = sphi 0, %s134
    %s152 = sphi 0, %s152
    %s154 = sphi 0, %s152
    %s155 = sphi 0, %s154
    %s169 = sphi 0, %s155
    %s175 = sphi 0, %s177
    %s178 = sphi 0, %s175
    %s179 = sphi 0, %s178
    %s195 = sphi 0, %s179
  $region4: #{tpu_custom_call.1} parent=0 // loop_header_branch
    %16 = sbr.rel (%p14) target = $region8
  $region5: #{tpu_custom_call.1} parent=0 // loop_body
    %s18 = ssub.s32 %s13, 1
    %s19 = ssub.s32 %s13, 2
    %s20 = sadd.s32 %s13, 1
    %s21 = ssub.s32 %s13, %s20
    %p22 = scmp.eq.s32.totalorder %s21, 0
    %s24 = sadd.s32 %s23, 1
    %s25 = scalar_select %p22, %s23, %s24
    %p28 = pneg %p22
    %p29 = scmp.eq.s32.totalorder %s13, 1
    %p30 = por %p28, %p29
    %p31 = scmp.ne.s32.totalorder %s23, %s26
    %p32 = scmp.eq.s32.totalorder %s13, 0
    %p33 = por %p31, %p32
    %p34 = scmp.ne.s32.totalorder %s23, %s26
    %p35 = scmp.eq.s32.totalorder %s18, 1
    %p36 = por %p34, %p35
    %p37 = scmp.ne.s32.totalorder %s26, %s27
    %p38 = scmp.eq.s32.totalorder %s18, 0
    %p39 = por %p37, %p38
    %p40 = scmp.ne.s32.totalorder %s26, %s27
    %p41 = scmp.eq.s32.totalorder %s19, 1
    %p42 = por %p40, %p41
    %p44 = scmp.ne.s32.totalorder %s27, %s43
    %p45 = scmp.eq.s32.totalorder %s19, 0
    %p46 = por %p44, %p45
    %s48 = sadd.s32 %s47, 1
    %p51 = scmp.eq.s32.totalorder %s13, 1
    %p52 = scmp.ne.s32.totalorder %s47, %s49
    %p53 = scmp.eq.s32.totalorder %s13, 0
    %p54 = por %p52, %p53
    %p55 = scmp.ne.s32.totalorder %s47, %s49
    %p56 = scmp.eq.s32.totalorder %s18, 1
    %p57 = por %p55, %p56
    %p58 = scmp.ne.s32.totalorder %s49, %s50
    %p59 = scmp.eq.s32.totalorder %s18, 0
    %p60 = por %p58, %p59
    %p61 = scmp.ne.s32.totalorder %s49, %s50
    %p62 = scmp.eq.s32.totalorder %s19, 1
    %p63 = por %p61, %p62
    %p65 = scmp.ne.s32.totalorder %s50, %s64
    %p66 = scmp.eq.s32.totalorder %s19, 0
    %p67 = por %p65, %p66
    %s69 = sadd.s32 %s68, 1
    %p72 = scmp.eq.s32.totalorder %s13, 1
    %p73 = scmp.ne.s32.totalorder %s68, %s70
    %p74 = scmp.eq.s32.totalorder %s13, 0
    %p75 = por %p73, %p74
    %p76 = scmp.ne.s32.totalorder %s68, %s70
    %p77 = scmp.eq.s32.totalorder %s18, 1
    %p78 = por %p76, %p77
    %p79 = scmp.ne.s32.totalorder %s70, %s71
    %p80 = scmp.eq.s32.totalorder %s18, 0
    %p81 = por %p79, %p80
    %p82 = scmp.ne.s32.totalorder %s70, %s71
    %p83 = scmp.eq.s32.totalorder %s19, 1
    %p84 = por %p82, %p83
    %p86 = scmp.ne.s32.totalorder %s71, %s85
    %p87 = scmp.eq.s32.totalorder %s19, 0
    %p88 = por %p86, %p87
    %s90 = sadd.s32 %s89, 1
    %p93 = scmp.eq.s32.totalorder %s13, 1
    %p94 = scmp.ne.s32.totalorder %s89, %s91
    %p95 = scmp.eq.s32.totalorder %s13, 0
    %p96 = por %p94, %p95
    %p97 = scmp.ne.s32.totalorder %s89, %s91
    %p98 = scmp.eq.s32.totalorder %s18, 1
    %p99 = por %p97, %p98
    %p100 = scmp.ne.s32.totalorder %s91, %s92
    %p101 = scmp.eq.s32.totalorder %s18, 0
    %p102 = por %p100, %p101
    %p103 = scmp.ne.s32.totalorder %s91, %s92
    %p104 = scmp.eq.s32.totalorder %s19, 1
    %p105 = por %p103, %p104
    %p107 = scmp.ne.s32.totalorder %s92, %s106
    %p108 = scmp.eq.s32.totalorder %s19, 0
    %p109 = por %p107, %p108
    %s111 = sadd.s32 %s110, 1
    %p114 = scmp.eq.s32.totalorder %s13, 1
    %p115 = scmp.ne.s32.totalorder %s110, %s112
    %p116 = scmp.eq.s32.totalorder %s13, 0
    %p117 = por %p115, %p116
    %p118 = scmp.ne.s32.totalorder %s110, %s112
    %p119 = scmp.eq.s32.totalorder %s18, 1
    %p120 = por %p118, %p119
    %p121 = scmp.ne.s32.totalorder %s112, %s113
    %p122 = scmp.eq.s32.totalorder %s18, 0
    %p123 = por %p121, %p122
    %p124 = scmp.ne.s32.totalorder %s112, %s113
    %p125 = scmp.eq.s32.totalorder %s19, 1
    %p126 = por %p124, %p125
    %p128 = scmp.ne.s32.totalorder %s113, %s127
    %p129 = scmp.eq.s32.totalorder %s19, 0
    %p130 = por %p128, %p129
    %s132 = sadd.s32 %s131, 1
    %p135 = scmp.eq.s32.totalorder %s13, 1
    %p136 = scmp.ne.s32.totalorder %s131, %s133
    %p137 = scmp.eq.s32.totalorder %s13, 0
    %p138 = por %p136, %p137
    %p139 = scmp.ne.s32.totalorder %s131, %s133
    %p140 = scmp.eq.s32.totalorder %s18, 1
    %p141 = por %p139, %p140
    %p142 = scmp.ne.s32.totalorder %s133, %s134
    %p143 = scmp.eq.s32.totalorder %s18, 0
    %p144 = por %p142, %p143
    %p145 = scmp.ne.s32.totalorder %s133, %s134
    %p146 = scmp.eq.s32.totalorder %s19, 1
    %p147 = por %p145, %p146
    %p149 = scmp.ne.s32.totalorder %s134, %s148
    %p150 = scmp.eq.s32.totalorder %s19, 0
    %p151 = por %p149, %p150
    %s153 = sadd.s32 %s152, 1
    %p156 = scmp.eq.s32.totalorder %s13, 1
    %p157 = scmp.ne.s32.totalorder %s152, %s154
    %p158 = scmp.eq.s32.totalorder %s13, 0
    %p159 = por %p157, %p158
    %p160 = scmp.ne.s32.totalorder %s152, %s154
    %p161 = scmp.eq.s32.totalorder %s18, 1
    %p162 = por %p160, %p161
    %p163 = scmp.ne.s32.totalorder %s154, %s155
    %p164 = scmp.eq.s32.totalorder %s18, 0
    %p165 = por %p163, %p164
    %p166 = scmp.ne.s32.totalorder %s154, %s155
    %p167 = scmp.eq.s32.totalorder %s19, 1
    %p168 = por %p166, %p167
    %p170 = scmp.ne.s32.totalorder %s155, %s169
    %p171 = scmp.eq.s32.totalorder %s19, 0
    %p172 = por %p170, %p171
    %s173 = ssub.s32 %s13, %s20
    %p174 = scmp.eq.s32.totalorder %s173, 0
    %s176 = sadd.s32 %s175, 1
    %s177 = scalar_select %p174, %s175, %s176
    %p180 = pneg %p174
    %p181 = scmp.eq.s32.totalorder %s13, 1
    %p182 = por %p180, %p181
    %p183 = scmp.ne.s32.totalorder %s175, %s178
    %p184 = scmp.eq.s32.totalorder %s13, 0
    %p185 = por %p183, %p184
    %p186 = scmp.ne.s32.totalorder %s175, %s178
    %p187 = scmp.eq.s32.totalorder %s18, 1
    %p188 = por %p186, %p187
    %p189 = scmp.ne.s32.totalorder %s178, %s179
    %p190 = scmp.eq.s32.totalorder %s18, 0
    %p191 = por %p189, %p190
    %p192 = scmp.ne.s32.totalorder %s178, %s179
    %p193 = scmp.eq.s32.totalorder %s19, 1
    %p194 = por %p192, %p193
    %p196 = scmp.ne.s32.totalorder %s179, %s195
    %p197 = scmp.eq.s32.totalorder %s19, 0
    %p198 = por %p196, %p197
    %p199 = scmp.le.s32.totalorder 1, %s13
    %p200 = scmp.lt.s32.totalorder %s13, 3
    %p201 = pnand %p199, %p200
    %p202 = pneg %p201
    // Predicated region
    $region9: #{tpu_custom_call.1} parent=5 // pred_check
      _
    $region10: #{tpu_custom_call.1} parent=5 // pred_check_branch
      %204 = sbr.rel (%p201) target = $region12
    $region11: #{tpu_custom_call.1} parent=5 // pred_region
      %s205 = ssub.s32 %s13, 1
      // Predicated region
      $region13: #{tpu_custom_call.1} parent=11 // pred_check
        %p206 = pneg %p60
      $region14: #{tpu_custom_call.1} parent=11 // pred_check_branch
        %208 = sbr.rel (%p206) target = $region16
      $region15: #{tpu_custom_call.1} parent=11 // pred_region
        _
      $region16: #{tpu_custom_call.1} parent=11 // pred_fallthru
        _
      // Predicated region
      $region17: #{tpu_custom_call.1} parent=11 // pred_check
        %p209 = pneg %p81
      $region18: #{tpu_custom_call.1} parent=11 // pred_check_branch
        %211 = sbr.rel (%p209) target = $region20
      $region19: #{tpu_custom_call.1} parent=11 // pred_region
        _
      $region20: #{tpu_custom_call.1} parent=11 // pred_fallthru
        _
      // Predicated region
      $region21: #{tpu_custom_call.1} parent=11 // pred_check
        %p212 = pneg %p102
      $region22: #{tpu_custom_call.1} parent=11 // pred_check_branch
        %214 = sbr.rel (%p212) target = $region24
      $region23: #{tpu_custom_call.1} parent=11 // pred_region
        _
      $region24: #{tpu_custom_call.1} parent=11 // pred_fallthru
        _
      // Predicated region
      $region25: #{tpu_custom_call.1} parent=11 // pred_check
        %p215 = pneg %p123
      $region26: #{tpu_custom_call.1} parent=11 // pred_check_branch
        %217 = sbr.rel (%p215) target = $region28
      $region27: #{tpu_custom_call.1} parent=11 // pred_region
        _
      $region28: #{tpu_custom_call.1} parent=11 // pred_fallthru
        _
      // Predicated region
      $region29: #{tpu_custom_call.1} parent=11 // pred_check
        %p218 = pneg %p144
      $region30: #{tpu_custom_call.1} parent=11 // pred_check_branch
        %220 = sbr.rel (%p218) target = $region32
      $region31: #{tpu_custom_call.1} parent=11 // pred_region
        _
      $region32: #{tpu_custom_call.1} parent=11 // pred_fallthru
        _
      // Predicated region
      $region33: #{tpu_custom_call.1} parent=11 // pred_check
        %p221 = pneg %p165
      $region34: #{tpu_custom_call.1} parent=11 // pred_check_branch
        %223 = sbr.rel (%p221) target = $region36
      $region35: #{tpu_custom_call.1} parent=11 // pred_region
        _
      $region36: #{tpu_custom_call.1} parent=11 // pred_fallthru
        _
    $region12: #{tpu_custom_call.1} parent=5 // pred_fallthru
      _
    %p224 = scmp.lt.s32.totalorder %s13, 2
    // Predicated region
    $region37: #{tpu_custom_call.1} parent=5 // pred_check
      %p225 = pneg %p224
    $region38: #{tpu_custom_call.1} parent=5 // pred_check_branch
      %227 = sbr.rel (%p225) target = $region40
    $region39: #{tpu_custom_call.1} parent=5 // pred_region
      // Predicated region
      $region41: #{tpu_custom_call.1} parent=39 // pred_check
        %p228 = pneg %p33
      $region42: #{tpu_custom_call.1} parent=39 // pred_check_branch
        %230 = sbr.rel (%p228) target = $region44
      $region43: #{tpu_custom_call.1} parent=39 // pred_region
        %s231 = smul.u32 32, %s13
        %p232 = scmp.lt.s32.totalorder %s231, 63
        %s233 = scalar_select %p232, %s231, 63
        %s234 = smul.addr %s233, 8
        %s235 = scalar_lea.vmem %s0, %s234
        %s236 = smul.u32 32, %s13
      $region44: #{tpu_custom_call.1} parent=39 // pred_fallthru
        _
    $region40: #{tpu_custom_call.1} parent=5 // pred_fallthru
      _
    %p237 = scmp.le.s32.totalorder 1, %s13
    %p238 = scmp.lt.s32.totalorder %s13, 3
    %p239 = pnand %p237, %p238
    %p240 = pneg %p239
    // Predicated region
    $region45: #{tpu_custom_call.1} parent=5 // pred_check
      _
    $region46: #{tpu_custom_call.1} parent=5 // pred_check_branch
      %242 = sbr.rel (%p239) target = $region48
    $region47: #{tpu_custom_call.1} parent=5 // pred_region
      %s243 = ssub.s32 %s13, 1
      %s244 = smul.u32 32, %s18
      %p245 = scmp.lt.s32.totalorder %s244, 63
      %s246 = scalar_select %p245, %s244, 63
      %s247 = smul.addr %s246, 8
      %s248 = scalar_lea.vmem %s0, %s247
      %p249 = pneg %p39
      %p250 = pneg %p36
      %p251 = pneg %p60
      %p252 = pneg %p57
      %p253 = pneg %p81
      %p254 = pneg %p78
      %p255 = pneg %p102
      %p256 = pneg %p99
      %p257 = pneg %p123
      %p258 = pneg %p120
      %p259 = pneg %p144
      %p260 = pneg %p141
      %p261 = pneg %p165
      %p262 = pneg %p162
      %p263 = pneg %p191
      %p264 = pneg %p188
      %s265 = smul.u32 32, %s18
      %p266 = scmp.lt.s32.totalorder %s265, 63
      %s267 = scalar_select %p266, %s265, 63
      %s268 = smul.addr %s267, 8
      %s269 = scalar_lea.vmem %s7, %s268
      %s270 = smul.u32 32, %s18
      %p271 = scmp.lt.s32.totalorder %s270, 63
      %s272 = scalar_select %p271, %s270, 63
      %s273 = smul.addr %s272, 8
      %s274 = scalar_lea.vmem %s0, %s273
      %s275 = smul.u32 32, %s18
      %s276 = smul.u32 32, %s18
      %p277 = scmp.lt.s32.totalorder %s276, 63
      %s278 = scalar_select %p277, %s276, 63
      %s279 = smul.addr %s278, 8
      %s280 = scalar_lea.vmem %s7, %s279
      %s281 = smul.u32 32, %s18
      %v283 = vld [vmem:[%s274] sm:$0xff]
      %v284 = vld [vmem:[%s274 + $0x8] sm:$0xff]
      %v285 = vld [vmem:[%s274 + $0x10] sm:$0xff]
      %v286 = vld [vmem:[%s274 + $0x18] sm:$0xff]
      %v287 = vld [vmem:[%s274 + $0x20] sm:$0xff]
      %v288 = vld [vmem:[%s274 + $0x28] sm:$0xff]
      %v289 = vld [vmem:[%s274 + $0x30] sm:$0xff]
      %v290 = vld [vmem:[%s274 + $0x38] sm:$0xff]
      %v291 = vld [vmem:[%s274 + $0x40] sm:$0xff]
      %v292 = vld [vmem:[%s274 + $0x48] sm:$0xff]
      %v293 = vld [vmem:[%s274 + $0x50] sm:$0xff]
      %v294 = vld [vmem:[%s274 + $0x58] sm:$0xff]
      %v295 = vld [vmem:[%s274 + $0x60] sm:$0xff]
      %v296 = vld [vmem:[%s274 + $0x68] sm:$0xff]
      %v297 = vld [vmem:[%s274 + $0x70] sm:$0xff]
      %v298 = vld [vmem:[%s274 + $0x78] sm:$0xff]
      %v299 = vld [vmem:[%s274 + $0x80] sm:$0xff]
      %v300 = vld [vmem:[%s274 + $0x88] sm:$0xff]
      %v301 = vld [vmem:[%s274 + $0x90] sm:$0xff]
      %v302 = vld [vmem:[%s274 + $0x98] sm:$0xff]
      %v303 = vld [vmem:[%s274 + $0xa0] sm:$0xff]
      %v304 = vld [vmem:[%s274 + $0xa8] sm:$0xff]
      %v305 = vld [vmem:[%s274 + $0xb0] sm:$0xff]
      %v306 = vld [vmem:[%s274 + $0xb8] sm:$0xff]
      %v307 = vld [vmem:[%s274 + $0xc0] sm:$0xff]
      %v308 = vld [vmem:[%s274 + $0xc8] sm:$0xff]
      %v309 = vld [vmem:[%s274 + $0xd0] sm:$0xff]
      %v310 = vld [vmem:[%s274 + $0xd8] sm:$0xff]
      %v311 = vld [vmem:[%s274 + $0xe0] sm:$0xff]
      %v312 = vld [vmem:[%s274 + $0xe8] sm:$0xff]
      %v313 = vld [vmem:[%s274 + $0xf0] sm:$0xff]
      %v314 = vld [vmem:[%s274 + $0xf8] sm:$0xff]
      %v315 = vpack.c.bf16 %v284, %v283
      %v316 = vpack.c.bf16 %v286, %v285
      %v317 = vpack.c.bf16 %v288, %v287
      %v318 = vpack.c.bf16 %v290, %v289
      %v319 = vpack.c.bf16 %v292, %v291
      %v320 = vpack.c.bf16 %v294, %v293
      %v321 = vpack.c.bf16 %v296, %v295
      %v322 = vpack.c.bf16 %v298, %v297
      %v323 = vpack.c.bf16 %v300, %v299
      %v324 = vpack.c.bf16 %v302, %v301
      %v325 = vpack.c.bf16 %v304, %v303
      %v326 = vpack.c.bf16 %v306, %v305
      %v327 = vpack.c.bf16 %v308, %v307
      %v328 = vpack.c.bf16 %v310, %v309
      %v329 = vpack.c.bf16 %v312, %v311
      %v330 = vpack.c.bf16 %v314, %v313
      %v331 = vld [vmem:[%s1] sm:$0xf]
      %v332 = vld [vmem:[%s2] sm:$0x1]
      %v334 = vlaneseq
      %v335 = vshrl.u32 %v334, 7
      %v336 = vsub.s32 0, %v335
      %v337 = vrot.slane %v332, %v336
      %vm339 = vcmask 64512
      %v341 = vsel %vm339, %v315, 0
      %v344 = vsel %vm339, %v316, 0
      %v347 = vsel %vm339, %v317, 0
      %v350 = vsel %vm339, %v318, 0
      %v353 = vsel %vm339, %v319, 0
      %v356 = vsel %vm339, %v320, 0
      %v359 = vsel %vm339, %v321, 0
      %v362 = vsel %vm339, %v322, 0
      %v365 = vsel %vm339, %v323, 0
      %v368 = vsel %vm339, %v324, 0
      %v371 = vsel %vm339, %v325, 0
      %v374 = vsel %vm339, %v326, 0
      %v377 = vsel %vm339, %v327, 0
      %v380 = vsel %vm339, %v328, 0
      %v383 = vsel %vm339, %v329, 0
      %v386 = vsel %vm339, %v330, 0
      %vm388 = vcmask 1043456
      %v390 = vsel %vm388, %v331, 0
      %392 = vmatprep.subr.bf16.mxu0 0
      %393 = vmatpush1.bf16.msra.mxu0 0
      %394 = vmatprep.subr.bf16.mxu0 0
      %395 = vmatpush1.bf16.msra.mxu0 0
      %396 = vmatprep.subr.bf16.mxu0 0
      %397 = vmatpush1.bf16.msra.mxu0 0
      %398 = vmatprep.subr.bf16.mxu0 0
      %399 = vmatpush1.bf16.msra.mxu0 0
      %400 = vmatprep.subr.bf16.mxu0 0
      %401 = vmatpush1.bf16.msra.mxu0 0
      %402 = vmatprep.subr.bf16.mxu0 0
      %403 = vmatpush1.bf16.msra.mxu0 0
      %404 = vmatprep.subr.bf16.mxu0 0
      %405 = vmatpush1.bf16.msra.mxu0 0
      %406 = vmatprep.subr.bf16.mxu0 0
      %407 = vmatpush1.bf16.msra.mxu0 %v390
      %408 = vmatprep.subr.bf16.mxu0 0
      %409 = vmatpush2.bf16.msra.mxu0 0
      %410 = vmatprep.subr.bf16.mxu0 0
      %411 = vmatpush2.bf16.msra.mxu0 0
      %412 = vmatprep.subr.bf16.mxu0 0
      %413 = vmatpush2.bf16.msra.mxu0 0
      %414 = vmatprep.subr.bf16.mxu0 0
      %415 = vmatpush2.bf16.msra.mxu0 0
      %416 = vmatprep.subr.bf16.mxu0 0
      %417 = vmatpush2.bf16.msra.mxu0 0
      %418 = vmatprep.subr.bf16.mxu0 0
      %419 = vmatpush2.bf16.msra.mxu0 0
      %420 = vmatprep.subr.bf16.mxu0 0
      %421 = vmatpush2.bf16.msra.mxu0 0
      %422 = vmatprep.subr.bf16.mxu0 0
      %423 = vmatpush2.bf16.msra.mxu0 0
      %424 = vmatprep.mubr.bf16.mxu0 0
      %425 = vmatmul.mubr.bf16.gmra.mxu0 %v341
      %v426 = vpop.f32.mrf.mxu0
      %v427 = vadd.f32 %v337, %v426
      %v428 = vpop.f32.mrf.mxu0
      %v429 = vpop.f32.mrf.mxu0
      %v430 = vadd.f32 %v337, %v429
      %v431 = vpop.f32.mrf.mxu0
      %432 = vmatprep.mubr.bf16.mxu0 0
      %433 = vmatmul.mubr.bf16.gmra.mxu0 %v344
      %v434 = vpop.f32.mrf.mxu0
      %v435 = vadd.f32 %v337, %v434
      %v436 = vpop.f32.mrf.mxu0
      %v437 = vpop.f32.mrf.mxu0
      %v438 = vadd.f32 %v337, %v437
      %v439 = vpop.f32.mrf.mxu0
      %440 = vmatprep.mubr.bf16.mxu0 0
      %441 = vmatmul.mubr.bf16.gmra.mxu0 %v347
      %v442 = vpop.f32.mrf.mxu0
      %v443 = vadd.f32 %v337, %v442
      %v444 = vpop.f32.mrf.mxu0
      %v445 = vpop.f32.mrf.mxu0
      %v446 = vadd.f32 %v337, %v445
      %v447 = vpop.f32.mrf.mxu0
      %448 = vmatprep.mubr.bf16.mxu0 0
      %449 = vmatmul.mubr.bf16.gmra.mxu0 %v350
      %v450 = vpop.f32.mrf.mxu0
      %v451 = vadd.f32 %v337, %v450
      %v452 = vpop.f32.mrf.mxu0
      %v453 = vpop.f32.mrf.mxu0
      %v454 = vadd.f32 %v337, %v453
      %v455 = vpop.f32.mrf.mxu0
      %456 = vmatprep.mubr.bf16.mxu0 0
      %457 = vmatmul.mubr.bf16.gmra.mxu0 %v353
      %v458 = vpop.f32.mrf.mxu0
      %v459 = vadd.f32 %v337, %v458
      %v460 = vpop.f32.mrf.mxu0
      %v461 = vpop.f32.mrf.mxu0
      %v462 = vadd.f32 %v337, %v461
      %v463 = vpop.f32.mrf.mxu0
      %464 = vmatprep.mubr.bf16.mxu0 0
      %465 = vmatmul.mubr.bf16.gmra.mxu0 %v356
      %v466 = vpop.f32.mrf.mxu0
      %v467 = vadd.f32 %v337, %v466
      %v468 = vpop.f32.mrf.mxu0
      %v469 = vpop.f32.mrf.mxu0
      %v470 = vadd.f32 %v337, %v469
      %v471 = vpop.f32.mrf.mxu0
      %472 = vmatprep.mubr.bf16.mxu0 0
      %473 = vmatmul.mubr.bf16.gmra.mxu0 %v359
      %v474 = vpop.f32.mrf.mxu0
      %v475 = vadd.f32 %v337, %v474
      %v476 = vpop.f32.mrf.mxu0
      %v477 = vpop.f32.mrf.mxu0
      %v478 = vadd.f32 %v337, %v477
      %v479 = vpop.f32.mrf.mxu0
      %480 = vmatprep.mubr.bf16.mxu0 0
      %481 = vmatmul.mubr.bf16.gmra.mxu0 %v362
      %v482 = vpop.f32.mrf.mxu0
      %v483 = vadd.f32 %v337, %v482
      %v484 = vpop.f32.mrf.mxu0
      %v485 = vpop.f32.mrf.mxu0
      %v486 = vadd.f32 %v337, %v485
      %v487 = vpop.f32.mrf.mxu0
      %488 = vmatprep.mubr.bf16.mxu0 0
      %489 = vmatmul.mubr.bf16.gmra.mxu0 %v365
      %v490 = vpop.f32.mrf.mxu0
      %v491 = vadd.f32 %v337, %v490
      %v492 = vpop.f32.mrf.mxu0
      %v493 = vpop.f32.mrf.mxu0
      %v494 = vadd.f32 %v337, %v493
      %v495 = vpop.f32.mrf.mxu0
      %496 = vmatprep.mubr.bf16.mxu0 0
      %497 = vmatmul.mubr.bf16.gmra.mxu0 %v368
      %v498 = vpop.f32.mrf.mxu0
      %v499 = vadd.f32 %v337, %v498
      %v500 = vpop.f32.mrf.mxu0
      %v501 = vpop.f32.mrf.mxu0
      %v502 = vadd.f32 %v337, %v501
      %v503 = vpop.f32.mrf.mxu0
      %504 = vmatprep.mubr.bf16.mxu0 0
      %505 = vmatmul.mubr.bf16.gmra.mxu0 %v371
      %v506 = vpop.f32.mrf.mxu0
      %v507 = vadd.f32 %v337, %v506
      %v508 = vpop.f32.mrf.mxu0
      %v509 = vpop.f32.mrf.mxu0
      %v510 = vadd.f32 %v337, %v509
      %v511 = vpop.f32.mrf.mxu0
      %512 = vmatprep.mubr.bf16.mxu0 0
      %513 = vmatmul.mubr.bf16.gmra.mxu0 %v374
      %v514 = vpop.f32.mrf.mxu0
      %v515 = vadd.f32 %v337, %v514
      %v516 = vpop.f32.mrf.mxu0
      %v517 = vpop.f32.mrf.mxu0
      %v518 = vadd.f32 %v337, %v517
      %v519 = vpop.f32.mrf.mxu0
      %520 = vmatprep.mubr.bf16.mxu0 0
      %521 = vmatmul.mubr.bf16.gmra.mxu0 %v377
      %v522 = vpop.f32.mrf.mxu0
      %v523 = vadd.f32 %v337, %v522
      %v524 = vpop.f32.mrf.mxu0
      %v525 = vpop.f32.mrf.mxu0
      %v526 = vadd.f32 %v337, %v525
      %v527 = vpop.f32.mrf.mxu0
      %528 = vmatprep.mubr.bf16.mxu0 0
      %529 = vmatmul.mubr.bf16.gmra.mxu0 %v380
      %v530 = vpop.f32.mrf.mxu0
      %v531 = vadd.f32 %v337, %v530
      %v532 = vpop.f32.mrf.mxu0
      %v533 = vpop.f32.mrf.mxu0
      %v534 = vadd.f32 %v337, %v533
      %v535 = vpop.f32.mrf.mxu0
      %536 = vmatprep.mubr.bf16.mxu0 0
      %537 = vmatmul.mubr.bf16.gmra.mxu0 %v383
      %v538 = vpop.f32.mrf.mxu0
      %v539 = vadd.f32 %v337, %v538
      %v540 = vpop.f32.mrf.mxu0
      %v541 = vpop.f32.mrf.mxu0
      %v542 = vadd.f32 %v337, %v541
      %v543 = vpop.f32.mrf.mxu0
      %544 = vmatprep.mubr.bf16.mxu0 0
      %545 = vmatmul.mubr.bf16.gmra.mxu0 %v386
      %v546 = vpop.f32.mrf.mxu0
      %v547 = vadd.f32 %v337, %v546
      %v548 = vpop.f32.mrf.mxu0
      %v549 = vpop.f32.mrf.mxu0
      %v550 = vadd.f32 %v337, %v549
      %v551 = vpop.f32.mrf.mxu0
      %552 = vdwg.mxu0
      %v553 = vmul.f32 %v427, 0.5
      %v554 = vmul.f32 %v430, 0.5
      %v555 = vmul.f32 %v435, 0.5
      %v556 = vmul.f32 %v438, 0.5
      %v557 = vmul.f32 %v443, 0.5
      %v558 = vmul.f32 %v446, 0.5
      %v559 = vmul.f32 %v451, 0.5
      %v560 = vmul.f32 %v454, 0.5
      %v561 = vmul.f32 %v459, 0.5
      %v562 = vmul.f32 %v462, 0.5
      %v563 = vmul.f32 %v467, 0.5
      %v564 = vmul.f32 %v470, 0.5
      %v565 = vmul.f32 %v475, 0.5
      %v566 = vmul.f32 %v478, 0.5
      %v567 = vmul.f32 %v483, 0.5
      %v568 = vmul.f32 %v486, 0.5
      %v569 = vmul.f32 %v491, 0.5
      %v570 = vmul.f32 %v494, 0.5
      %v571 = vmul.f32 %v499, 0.5
      %v572 = vmul.f32 %v502, 0.5
      %v573 = vmul.f32 %v507, 0.5
      %v574 = vmul.f32 %v510, 0.5
      %v575 = vmul.f32 %v515, 0.5
      %v576 = vmul.f32 %v518, 0.5
      %v577 = vmul.f32 %v523, 0.5
      %v578 = vmul.f32 %v526, 0.5
      %v579 = vmul.f32 %v531, 0.5
      %v580 = vmul.f32 %v534, 0.5
      %v581 = vmul.f32 %v539, 0.5
      %v582 = vmul.f32 %v542, 0.5
      %v583 = vmul.f32 %v547, 0.5
      %v584 = vmul.f32 %v550, 0.5
      %v585 = vmul.f32 %v427, 0.70710677
      %v586 = vmul.f32 %v430, 0.70710677
      %v587 = vmul.f32 %v435, 0.70710677
      %v588 = vmul.f32 %v438, 0.70710677
      %v589 = vmul.f32 %v443, 0.70710677
      %v590 = vmul.f32 %v446, 0.70710677
      %v591 = vmul.f32 %v451, 0.70710677
      %v592 = vmul.f32 %v454, 0.70710677
      %v593 = vmul.f32 %v459, 0.70710677
      %v594 = vmul.f32 %v462, 0.70710677
      %v595 = vmul.f32 %v467, 0.70710677
      %v596 = vmul.f32 %v470, 0.70710677
      %v597 = vmul.f32 %v475, 0.70710677
      %v598 = vmul.f32 %v478, 0.70710677
      %v599 = vmul.f32 %v483, 0.70710677
      %v600 = vmul.f32 %v486, 0.70710677
      %v601 = vmul.f32 %v491, 0.70710677
      %v602 = vmul.f32 %v494, 0.70710677
      %v603 = vmul.f32 %v499, 0.70710677
      %v604 = vmul.f32 %v502, 0.70710677
      %v605 = vmul.f32 %v507, 0.70710677
      %v606 = vmul.f32 %v510, 0.70710677
      %v607 = vmul.f32 %v515, 0.70710677
      %v608 = vmul.f32 %v518, 0.70710677
      %v609 = vmul.f32 %v523, 0.70710677
      %v610 = vmul.f32 %v526, 0.70710677
      %v611 = vmul.f32 %v531, 0.70710677
      %v612 = vmul.f32 %v534, 0.70710677
      %v613 = vmul.f32 %v539, 0.70710677
      %v614 = vmul.f32 %v542, 0.70710677
      %v615 = vmul.f32 %v547, 0.70710677
      %v616 = vmul.f32 %v550, 0.70710677
      %v617 = verf.f32.pop %v585
      %v618 = verf.f32.pop %v586
      %v619 = verf.f32.pop %v587
      %v620 = verf.f32.pop %v588
      %v621 = verf.f32.pop %v589
      %v622 = verf.f32.pop %v590
      %v623 = verf.f32.pop %v591
      %v624 = verf.f32.pop %v592
      %v625 = verf.f32.pop %v593
      %v626 = verf.f32.pop %v594
      %v627 = verf.f32.pop %v595
      %v628 = verf.f32.pop %v596
      %v629 = verf.f32.pop %v597
      %v630 = verf.f32.pop %v598
      %v631 = verf.f32.pop %v599
      %v632 = verf.f32.pop %v600
      %v633 = verf.f32.pop %v601
      %v634 = verf.f32.pop %v602
      %v635 = verf.f32.pop %v603
      %v636 = verf.f32.pop %v604
      %v637 = verf.f32.pop %v605
      %v638 = verf.f32.pop %v606
      %v639 = verf.f32.pop %v607
      %v640 = verf.f32.pop %v608
      %v641 = verf.f32.pop %v609
      %v642 = verf.f32.pop %v610
      %v643 = verf.f32.pop %v611
      %v644 = verf.f32.pop %v612
      %v645 = verf.f32.pop %v613
      %v646 = verf.f32.pop %v614
      %v647 = verf.f32.pop %v615
      %v648 = verf.f32.pop %v616
      %v649 = vadd.f32 %v617, 1.0
      %v650 = vadd.f32 %v618, 1.0
      %v651 = vadd.f32 %v619, 1.0
      %v652 = vadd.f32 %v620, 1.0
      %v653 = vadd.f32 %v621, 1.0
      %v654 = vadd.f32 %v622, 1.0
      %v655 = vadd.f32 %v623, 1.0
      %v656 = vadd.f32 %v624, 1.0
      %v657 = vadd.f32 %v625, 1.0
      %v658 = vadd.f32 %v626, 1.0
      %v659 = vadd.f32 %v627, 1.0
      %v660 = vadd.f32 %v628, 1.0
      %v661 = vadd.f32 %v629, 1.0
      %v662 = vadd.f32 %v630, 1.0
      %v663 = vadd.f32 %v631, 1.0
      %v664 = vadd.f32 %v632, 1.0
      %v665 = vadd.f32 %v633, 1.0
      %v666 = vadd.f32 %v634, 1.0
      %v667 = vadd.f32 %v635, 1.0
      %v668 = vadd.f32 %v636, 1.0
      %v669 = vadd.f32 %v637, 1.0
      %v670 = vadd.f32 %v638, 1.0
      %v671 = vadd.f32 %v639, 1.0
      %v672 = vadd.f32 %v640, 1.0
      %v673 = vadd.f32 %v641, 1.0
      %v674 = vadd.f32 %v642, 1.0
      %v675 = vadd.f32 %v643, 1.0
      %v676 = vadd.f32 %v644, 1.0
      %v677 = vadd.f32 %v645, 1.0
      %v678 = vadd.f32 %v646, 1.0
      %v679 = vadd.f32 %v647, 1.0
      %v680 = vadd.f32 %v648, 1.0
      %v681 = vmul.f32 %v553, %v649
      %v682 = vmul.f32 %v554, %v650
      %v683 = vmul.f32 %v555, %v651
      %v684 = vmul.f32 %v556, %v652
      %v685 = vmul.f32 %v557, %v653
      %v686 = vmul.f32 %v558, %v654
      %v687 = vmul.f32 %v559, %v655
      %v688 = vmul.f32 %v560, %v656
      %v689 = vmul.f32 %v561, %v657
      %v690 = vmul.f32 %v562, %v658
      %v691 = vmul.f32 %v563, %v659
      %v692 = vmul.f32 %v564, %v660
      %v693 = vmul.f32 %v565, %v661
      %v694 = vmul.f32 %v566, %v662
      %v695 = vmul.f32 %v567, %v663
      %v696 = vmul.f32 %v568, %v664
      %v697 = vmul.f32 %v569, %v665
      %v698 = vmul.f32 %v570, %v666
      %v699 = vmul.f32 %v571, %v667
      %v700 = vmul.f32 %v572, %v668
      %v701 = vmul.f32 %v573, %v669
      %v702 = vmul.f32 %v574, %v670
      %v703 = vmul.f32 %v575, %v671
      %v704 = vmul.f32 %v576, %v672
      %v705 = vmul.f32 %v577, %v673
      %v706 = vmul.f32 %v578, %v674
      %v707 = vmul.f32 %v579, %v675
      %v708 = vmul.f32 %v580, %v676
      %v709 = vmul.f32 %v581, %v677
      %v710 = vmul.f32 %v582, %v678
      %v711 = vmul.f32 %v583, %v679
      %v712 = vmul.f32 %v584, %v680
      %v713 = vpack.c.bf16 %v682, %v681
      %v714 = vpack.c.bf16 %v684, %v683
      %v715 = vpack.c.bf16 %v686, %v685
      %v716 = vpack.c.bf16 %v688, %v687
      %v717 = vpack.c.bf16 %v690, %v689
      %v718 = vpack.c.bf16 %v692, %v691
      %v719 = vpack.c.bf16 %v694, %v693
      %v720 = vpack.c.bf16 %v696, %v695
      %v721 = vpack.c.bf16 %v698, %v697
      %v722 = vpack.c.bf16 %v700, %v699
      %v723 = vpack.c.bf16 %v702, %v701
      %v724 = vpack.c.bf16 %v704, %v703
      %v725 = vpack.c.bf16 %v706, %v705
      %v726 = vpack.c.bf16 %v708, %v707
      %v727 = vpack.c.bf16 %v710, %v709
      %v728 = vpack.c.bf16 %v712, %v711
      %v729 = vld [vmem:[%s3] sm:$0xf]
      %v730 = vld [vmem:[%s3 + $0x4] sm:$0xf]
      %v731 = vld [vmem:[%s3 + $0x8] sm:$0xf]
      %v732 = vld [vmem:[%s3 + $0xc] sm:$0xf]
      %v733 = vld [vmem:[%s3 + $0x10] sm:$0xf]
      %v734 = vld [vmem:[%s3 + $0x14] sm:$0xf]
      %v735 = vld [vmem:[%s3 + $0x18] sm:$0xf]
      %v736 = vld [vmem:[%s3 + $0x1c] sm:$0xf]
      %v737 = vld [vmem:[%s3 + $0x20] sm:$0xf]
      %v738 = vld [vmem:[%s3 + $0x24] sm:$0xf]
      %v739 = vld [vmem:[%s3 + $0x28] sm:$0xf]
      %v740 = vld [vmem:[%s3 + $0x2c] sm:$0xf]
      %v741 = vld [vmem:[%s3 + $0x30] sm:$0xf]
      %v742 = vld [vmem:[%s3 + $0x34] sm:$0xf]
      %v743 = vld [vmem:[%s3 + $0x38] sm:$0xf]
      %v744 = vld [vmem:[%s3 + $0x3c] sm:$0xf]
      %v745 = vld [vmem:[%s4] sm:$0x1]
      %v747 = vlaneseq
      %v748 = vshrl.u32 %v747, 7
      %v749 = vsub.s32 0, %v748
      %v750 = vrot.slane %v745, %v749
      %v768 = vunpack.c.l.b16 %v729
      %v769 = vunpack.c.l.b16 %v730
      %v770 = vunpack.c.l.b16 %v731
      %v771 = vunpack.c.l.b16 %v732
      %v772 = vunpack.c.l.b16 %v733
      %v773 = vunpack.c.l.b16 %v734
      %v774 = vunpack.c.l.b16 %v735
      %v775 = vunpack.c.l.b16 %v736
      %v776 = vunpack.c.l.b16 %v737
      %v777 = vunpack.c.l.b16 %v738
      %v778 = vunpack.c.l.b16 %v739
      %v779 = vunpack.c.l.b16 %v740
      %v780 = vunpack.c.l.b16 %v741
      %v781 = vunpack.c.l.b16 %v742
      %v782 = vunpack.c.l.b16 %v743
      %v783 = vunpack.c.l.b16 %v744
      %v784 = vpack.c.b16 %v769, %v768
      %v785 = vpack.c.b16 %v771, %v770
      %v786 = vpack.c.b16 %v773, %v772
      %v787 = vpack.c.b16 %v775, %v774
      %v788 = vpack.c.b16 %v777, %v776
      %v789 = vpack.c.b16 %v779, %v778
      %v790 = vpack.c.b16 %v781, %v780
      %v791 = vpack.c.b16 %v783, %v782
      %800 = vmatprep.subr.bf16.mxu0 0
      %801 = vmatpush1.bf16.msra.mxu0 %v791
      %802 = vmatprep.subr.bf16.mxu0 0
      %803 = vmatpush1.bf16.msra.mxu0 %v790
      %804 = vmatprep.subr.bf16.mxu0 0
      %805 = vmatpush1.bf16.msra.mxu0 %v789
      %806 = vmatprep.subr.bf16.mxu0 0
      %807 = vmatpush1.bf16.msra.mxu0 %v788
      %808 = vmatprep.subr.bf16.mxu0 0
      %809 = vmatpush1.bf16.msra.mxu0 %v787
      %810 = vmatprep.subr.bf16.mxu0 0
      %811 = vmatpush1.bf16.msra.mxu0 %v786
      %812 = vmatprep.subr.bf16.mxu0 0
      %813 = vmatpush1.bf16.msra.mxu0 %v785
      %814 = vmatprep.subr.bf16.mxu0 0
      %815 = vmatpush1.bf16.msra.mxu0 %v784
      %816 = vmatprep.subr.bf16.mxu0 0
      %817 = vmatpush2.bf16.msra.mxu0 0
      %818 = vmatprep.subr.bf16.mxu0 0
      %819 = vmatpush2.bf16.msra.mxu0 0
      %820 = vmatprep.subr.bf16.mxu0 0
      %821 = vmatpush2.bf16.msra.mxu0 0
      %822 = vmatprep.subr.bf16.mxu0 0
      %823 = vmatpush2.bf16.msra.mxu0 0
      %824 = vmatprep.subr.bf16.mxu0 0
      %825 = vmatpush2.bf16.msra.mxu0 0
      %826 = vmatprep.subr.bf16.mxu0 0
      %827 = vmatpush2.bf16.msra.mxu0 0
      %828 = vmatprep.subr.bf16.mxu0 0
      %829 = vmatpush2.bf16.msra.mxu0 0
      %830 = vmatprep.subr.bf16.mxu0 0
      %831 = vmatpush2.bf16.msra.mxu0 0
      %832 = vmatprep.mubr.bf16.mxu0 0
      %833 = vmatmul.mubr.bf16.gmra.mxu0 %v713
      %v834 = vpop.f32.mrf.mxu0
      %v835 = vadd.f32 %v750, %v834
      %v836 = vpop.f32.mrf.mxu0
      %v837 = vpop.f32.mrf.mxu0
      %v838 = vadd.f32 %v750, %v837
      %v839 = vpop.f32.mrf.mxu0
      %840 = vmatprep.mubr.bf16.mxu0 0
      %841 = vmatmul.mubr.bf16.gmra.mxu0 %v714
      %v842 = vpop.f32.mrf.mxu0
      %v843 = vadd.f32 %v750, %v842
      %v844 = vpop.f32.mrf.mxu0
      %v845 = vpop.f32.mrf.mxu0
      %v846 = vadd.f32 %v750, %v845
      %v847 = vpop.f32.mrf.mxu0
      %848 = vmatprep.mubr.bf16.mxu0 0
      %849 = vmatmul.mubr.bf16.gmra.mxu0 %v715
      %v850 = vpop.f32.mrf.mxu0
      %v851 = vadd.f32 %v750, %v850
      %v852 = vpop.f32.mrf.mxu0
      %v853 = vpop.f32.mrf.mxu0
      %v854 = vadd.f32 %v750, %v853
      %v855 = vpop.f32.mrf.mxu0
      %856 = vmatprep.mubr.bf16.mxu0 0
      %857 = vmatmul.mubr.bf16.gmra.mxu0 %v716
      %v858 = vpop.f32.mrf.mxu0
      %v859 = vadd.f32 %v750, %v858
      %v860 = vpop.f32.mrf.mxu0
      %v861 = vpop.f32.mrf.mxu0
      %v862 = vadd.f32 %v750, %v861
      %v863 = vpop.f32.mrf.mxu0
      %864 = vmatprep.mubr.bf16.mxu0 0
      %865 = vmatmul.mubr.bf16.gmra.mxu0 %v717
      %v866 = vpop.f32.mrf.mxu0
      %v867 = vadd.f32 %v750, %v866
      %v868 = vpop.f32.mrf.mxu0
      %v869 = vpop.f32.mrf.mxu0
      %v870 = vadd.f32 %v750, %v869
      %v871 = vpop.f32.mrf.mxu0
      %872 = vmatprep.mubr.bf16.mxu0 0
      %873 = vmatmul.mubr.bf16.gmra.mxu0 %v718
      %v874 = vpop.f32.mrf.mxu0
      %v875 = vadd.f32 %v750, %v874
      %v876 = vpop.f32.mrf.mxu0
      %v877 = vpop.f32.mrf.mxu0
      %v878 = vadd.f32 %v750, %v877
      %v879 = vpop.f32.mrf.mxu0
      %880 = vmatprep.mubr.bf16.mxu0 0
      %881 = vmatmul.mubr.bf16.gmra.mxu0 %v719
      %v882 = vpop.f32.mrf.mxu0
      %v883 = vadd.f32 %v750, %v882
      %v884 = vpop.f32.mrf.mxu0
      %v885 = vpop.f32.mrf.mxu0
      %v886 = vadd.f32 %v750, %v885
      %v887 = vpop.f32.mrf.mxu0
      %888 = vmatprep.mubr.bf16.mxu0 0
      %889 = vmatmul.mubr.bf16.gmra.mxu0 %v720
      %v890 = vpop.f32.mrf.mxu0
      %v891 = vadd.f32 %v750, %v890
      %v892 = vpop.f32.mrf.mxu0
      %v893 = vpop.f32.mrf.mxu0
      %v894 = vadd.f32 %v750, %v893
      %v895 = vpop.f32.mrf.mxu0
      %896 = vmatprep.mubr.bf16.mxu0 0
      %897 = vmatmul.mubr.bf16.gmra.mxu0 %v721
      %v898 = vpop.f32.mrf.mxu0
      %v899 = vadd.f32 %v750, %v898
      %v900 = vpop.f32.mrf.mxu0
      %v901 = vpop.f32.mrf.mxu0
      %v902 = vadd.f32 %v750, %v901
      %v903 = vpop.f32.mrf.mxu0
      %904 = vmatprep.mubr.bf16.mxu0 0
      %905 = vmatmul.mubr.bf16.gmra.mxu0 %v722
      %v906 = vpop.f32.mrf.mxu0
      %v907 = vadd.f32 %v750, %v906
      %v908 = vpop.f32.mrf.mxu0
      %v909 = vpop.f32.mrf.mxu0
      %v910 = vadd.f32 %v750, %v909
      %v911 = vpop.f32.mrf.mxu0
      %912 = vmatprep.mubr.bf16.mxu0 0
      %913 = vmatmul.mubr.bf16.gmra.mxu0 %v723
      %v914 = vpop.f32.mrf.mxu0
      %v915 = vadd.f32 %v750, %v914
      %v916 = vpop.f32.mrf.mxu0
      %v917 = vpop.f32.mrf.mxu0
      %v918 = vadd.f32 %v750, %v917
      %v919 = vpop.f32.mrf.mxu0
      %920 = vmatprep.mubr.bf16.mxu0 0
      %921 = vmatmul.mubr.bf16.gmra.mxu0 %v724
      %v922 = vpop.f32.mrf.mxu0
      %v923 = vadd.f32 %v750, %v922
      %v924 = vpop.f32.mrf.mxu0
      %v925 = vpop.f32.mrf.mxu0
      %v926 = vadd.f32 %v750, %v925
      %v927 = vpop.f32.mrf.mxu0
      %928 = vmatprep.mubr.bf16.mxu0 0
      %929 = vmatmul.mubr.bf16.gmra.mxu0 %v725
      %v930 = vpop.f32.mrf.mxu0
      %v931 = vadd.f32 %v750, %v930
      %v932 = vpop.f32.mrf.mxu0
      %v933 = vpop.f32.mrf.mxu0
      %v934 = vadd.f32 %v750, %v933
      %v935 = vpop.f32.mrf.mxu0
      %936 = vmatprep.mubr.bf16.mxu0 0
      %937 = vmatmul.mubr.bf16.gmra.mxu0 %v726
      %v938 = vpop.f32.mrf.mxu0
      %v939 = vadd.f32 %v750, %v938
      %v940 = vpop.f32.mrf.mxu0
      %v941 = vpop.f32.mrf.mxu0
      %v942 = vadd.f32 %v750, %v941
      %v943 = vpop.f32.mrf.mxu0
      %944 = vmatprep.mubr.bf16.mxu0 0
      %945 = vmatmul.mubr.bf16.gmra.mxu0 %v727
      %v946 = vpop.f32.mrf.mxu0
      %v947 = vadd.f32 %v750, %v946
      %v948 = vpop.f32.mrf.mxu0
      %v949 = vpop.f32.mrf.mxu0
      %v950 = vadd.f32 %v750, %v949
      %v951 = vpop.f32.mrf.mxu0
      %952 = vmatprep.mubr.bf16.mxu0 0
      %953 = vmatmul.mubr.bf16.gmra.mxu0 %v728
      %v954 = vpop.f32.mrf.mxu0
      %v955 = vadd.f32 %v750, %v954
      %v956 = vpop.f32.mrf.mxu0
      %v957 = vpop.f32.mrf.mxu0
      %v958 = vadd.f32 %v750, %v957
      %v959 = vpop.f32.mrf.mxu0
      %960 = vdwg.mxu0
      %v961 = vmul.f32 %v835, 0.5
      %v962 = vmul.f32 %v838, 0.5
      %v963 = vmul.f32 %v843, 0.5
      %v964 = vmul.f32 %v846, 0.5
      %v965 = vmul.f32 %v851, 0.5
      %v966 = vmul.f32 %v854, 0.5
      %v967 = vmul.f32 %v859, 0.5
      %v968 = vmul.f32 %v862, 0.5
      %v969 = vmul.f32 %v867, 0.5
      %v970 = vmul.f32 %v870, 0.5
      %v971 = vmul.f32 %v875, 0.5
      %v972 = vmul.f32 %v878, 0.5
      %v973 = vmul.f32 %v883, 0.5
      %v974 = vmul.f32 %v886, 0.5
      %v975 = vmul.f32 %v891, 0.5
      %v976 = vmul.f32 %v894, 0.5
      %v977 = vmul.f32 %v899, 0.5
      %v978 = vmul.f32 %v902, 0.5
      %v979 = vmul.f32 %v907, 0.5
      %v980 = vmul.f32 %v910, 0.5
      %v981 = vmul.f32 %v915, 0.5
      %v982 = vmul.f32 %v918, 0.5
      %v983 = vmul.f32 %v923, 0.5
      %v984 = vmul.f32 %v926, 0.5
      %v985 = vmul.f32 %v931, 0.5
      %v986 = vmul.f32 %v934, 0.5
      %v987 = vmul.f32 %v939, 0.5
      %v988 = vmul.f32 %v942, 0.5
      %v989 = vmul.f32 %v947, 0.5
      %v990 = vmul.f32 %v950, 0.5
      %v991 = vmul.f32 %v955, 0.5
      %v992 = vmul.f32 %v958, 0.5
      %v993 = vmul.f32 %v835, 0.70710677
      %v994 = vmul.f32 %v838, 0.70710677
      %v995 = vmul.f32 %v843, 0.70710677
      %v996 = vmul.f32 %v846, 0.70710677
      %v997 = vmul.f32 %v851, 0.70710677
      %v998 = vmul.f32 %v854, 0.70710677
      %v999 = vmul.f32 %v859, 0.70710677
      %v1000 = vmul.f32 %v862, 0.70710677
      %v1001 = vmul.f32 %v867, 0.70710677
      %v1002 = vmul.f32 %v870, 0.70710677
      %v1003 = vmul.f32 %v875, 0.70710677
      %v1004 = vmul.f32 %v878, 0.70710677
      %v1005 = vmul.f32 %v883, 0.70710677
      %v1006 = vmul.f32 %v886, 0.70710677
      %v1007 = vmul.f32 %v891, 0.70710677
      %v1008 = vmul.f32 %v894, 0.70710677
      %v1009 = vmul.f32 %v899, 0.70710677
      %v1010 = vmul.f32 %v902, 0.70710677
      %v1011 = vmul.f32 %v907, 0.70710677
      %v1012 = vmul.f32 %v910, 0.70710677
      %v1013 = vmul.f32 %v915, 0.70710677
      %v1014 = vmul.f32 %v918, 0.70710677
      %v1015 = vmul.f32 %v923, 0.70710677
      %v1016 = vmul.f32 %v926, 0.70710677
      %v1017 = vmul.f32 %v931, 0.70710677
      %v1018 = vmul.f32 %v934, 0.70710677
      %v1019 = vmul.f32 %v939, 0.70710677
      %v1020 = vmul.f32 %v942, 0.70710677
      %v1021 = vmul.f32 %v947, 0.70710677
      %v1022 = vmul.f32 %v950, 0.70710677
      %v1023 = vmul.f32 %v955, 0.70710677
      %v1024 = vmul.f32 %v958, 0.70710677
      %v1025 = verf.f32.pop %v993
      %v1026 = verf.f32.pop %v994
      %v1027 = verf.f32.pop %v995
      %v1028 = verf.f32.pop %v996
      %v1029 = verf.f32.pop %v997
      %v1030 = verf.f32.pop %v998
      %v1031 = verf.f32.pop %v999
      %v1032 = verf.f32.pop %v1000
      %v1033 = verf.f32.pop %v1001
      %v1034 = verf.f32.pop %v1002
      %v1035 = verf.f32.pop %v1003
      %v1036 = verf.f32.pop %v1004
      %v1037 = verf.f32.pop %v1005
      %v1038 = verf.f32.pop %v1006
      %v1039 = verf.f32.pop %v1007
      %v1040 = verf.f32.pop %v1008
      %v1041 = verf.f32.pop %v1009
      %v1042 = verf.f32.pop %v1010
      %v1043 = verf.f32.pop %v1011
      %v1044 = verf.f32.pop %v1012
      %v1045 = verf.f32.pop %v1013
      %v1046 = verf.f32.pop %v1014
      %v1047 = verf.f32.pop %v1015
      %v1048 = verf.f32.pop %v1016
      %v1049 = verf.f32.pop %v1017
      %v1050 = verf.f32.pop %v1018
      %v1051 = verf.f32.pop %v1019
      %v1052 = verf.f32.pop %v1020
      %v1053 = verf.f32.pop %v1021
      %v1054 = verf.f32.pop %v1022
      %v1055 = verf.f32.pop %v1023
      %v1056 = verf.f32.pop %v1024
      %v1057 = vadd.f32 %v1025, 1.0
      %v1058 = vadd.f32 %v1026, 1.0
      %v1059 = vadd.f32 %v1027, 1.0
      %v1060 = vadd.f32 %v1028, 1.0
      %v1061 = vadd.f32 %v1029, 1.0
      %v1062 = vadd.f32 %v1030, 1.0
      %v1063 = vadd.f32 %v1031, 1.0
      %v1064 = vadd.f32 %v1032, 1.0
      %v1065 = vadd.f32 %v1033, 1.0
      %v1066 = vadd.f32 %v1034, 1.0
      %v1067 = vadd.f32 %v1035, 1.0
      %v1068 = vadd.f32 %v1036, 1.0
      %v1069 = vadd.f32 %v1037, 1.0
      %v1070 = vadd.f32 %v1038, 1.0
      %v1071 = vadd.f32 %v1039, 1.0
      %v1072 = vadd.f32 %v1040, 1.0
      %v1073 = vadd.f32 %v1041, 1.0
      %v1074 = vadd.f32 %v1042, 1.0
      %v1075 = vadd.f32 %v1043, 1.0
      %v1076 = vadd.f32 %v1044, 1.0
      %v1077 = vadd.f32 %v1045, 1.0
      %v1078 = vadd.f32 %v1046, 1.0
      %v1079 = vadd.f32 %v1047, 1.0
      %v1080 = vadd.f32 %v1048, 1.0
      %v1081 = vadd.f32 %v1049, 1.0
      %v1082 = vadd.f32 %v1050, 1.0
      %v1083 = vadd.f32 %v1051, 1.0
      %v1084 = vadd.f32 %v1052, 1.0
      %v1085 = vadd.f32 %v1053, 1.0
      %v1086 = vadd.f32 %v1054, 1.0
      %v1087 = vadd.f32 %v1055, 1.0
      %v1088 = vadd.f32 %v1056, 1.0
      %v1089 = vmul.f32 %v961, %v1057
      %v1090 = vmul.f32 %v962, %v1058
      %v1091 = vmul.f32 %v963, %v1059
      %v1092 = vmul.f32 %v964, %v1060
      %v1093 = vmul.f32 %v965, %v1061
      %v1094 = vmul.f32 %v966, %v1062
      %v1095 = vmul.f32 %v967, %v1063
      %v1096 = vmul.f32 %v968, %v1064
      %v1097 = vmul.f32 %v969, %v1065
      %v1098 = vmul.f32 %v970, %v1066
      %v1099 = vmul.f32 %v971, %v1067
      %v1100 = vmul.f32 %v972, %v1068
      %v1101 = vmul.f32 %v973, %v1069
      %v1102 = vmul.f32 %v974, %v1070
      %v1103 = vmul.f32 %v975, %v1071
      %v1104 = vmul.f32 %v976, %v1072
      %v1105 = vmul.f32 %v977, %v1073
      %v1106 = vmul.f32 %v978, %v1074
      %v1107 = vmul.f32 %v979, %v1075
      %v1108 = vmul.f32 %v980, %v1076
      %v1109 = vmul.f32 %v981, %v1077
      %v1110 = vmul.f32 %v982, %v1078
      %v1111 = vmul.f32 %v983, %v1079
      %v1112 = vmul.f32 %v984, %v1080
      %v1113 = vmul.f32 %v985, %v1081
      %v1114 = vmul.f32 %v986, %v1082
      %v1115 = vmul.f32 %v987, %v1083
      %v1116 = vmul.f32 %v988, %v1084
      %v1117 = vmul.f32 %v989, %v1085
      %v1118 = vmul.f32 %v990, %v1086
      %v1119 = vmul.f32 %v991, %v1087
      %v1120 = vmul.f32 %v992, %v1088
      %v1121 = vpack.c.bf16 %v1090, %v1089
      %v1122 = vpack.c.bf16 %v1092, %v1091
      %v1123 = vpack.c.bf16 %v1094, %v1093
      %v1124 = vpack.c.bf16 %v1096, %v1095
      %v1125 = vpack.c.bf16 %v1098, %v1097
      %v1126 = vpack.c.bf16 %v1100, %v1099
      %v1127 = vpack.c.bf16 %v1102, %v1101
      %v1128 = vpack.c.bf16 %v1104, %v1103
      %v1129 = vpack.c.bf16 %v1106, %v1105
      %v1130 = vpack.c.bf16 %v1108, %v1107
      %v1131 = vpack.c.bf16 %v1110, %v1109
      %v1132 = vpack.c.bf16 %v1112, %v1111
      %v1133 = vpack.c.bf16 %v1114, %v1113
      %v1134 = vpack.c.bf16 %v1116, %v1115
      %v1135 = vpack.c.bf16 %v1118, %v1117
      %v1136 = vpack.c.bf16 %v1120, %v1119
      %v1137 = vld [vmem:[%s5] sm:$0xf]
      %v1138 = vld [vmem:[%s5 + $0x4] sm:$0xf]
      %v1139 = vld [vmem:[%s5 + $0x8] sm:$0xf]
      %v1140 = vld [vmem:[%s5 + $0xc] sm:$0xf]
      %v1141 = vld [vmem:[%s5 + $0x10] sm:$0xf]
      %v1142 = vld [vmem:[%s5 + $0x14] sm:$0xf]
      %v1143 = vld [vmem:[%s5 + $0x18] sm:$0xf]
      %v1144 = vld [vmem:[%s5 + $0x1c] sm:$0xf]
      %v1145 = vld [vmem:[%s5 + $0x20] sm:$0xf]
      %v1146 = vld [vmem:[%s5 + $0x24] sm:$0xf]
      %v1147 = vld [vmem:[%s5 + $0x28] sm:$0xf]
      %v1148 = vld [vmem:[%s5 + $0x2c] sm:$0xf]
      %v1149 = vld [vmem:[%s5 + $0x30] sm:$0xf]
      %v1150 = vld [vmem:[%s5 + $0x34] sm:$0xf]
      %v1151 = vld [vmem:[%s5 + $0x38] sm:$0xf]
      %v1152 = vld [vmem:[%s5 + $0x3c] sm:$0xf]
      %v1153 = vld [vmem:[%s6] sm:$0x1]
      %v1155 = vlaneseq
      %v1156 = vshrl.u32 %v1155, 7
      %v1157 = vsub.s32 0, %v1156
      %v1158 = vrot.slane %v1153, %v1157
      %v1176 = vunpack.c.l.b16 %v1137
      %v1177 = vunpack.c.l.b16 %v1138
      %v1178 = vunpack.c.l.b16 %v1139
      %v1179 = vunpack.c.l.b16 %v1140
      %v1180 = vunpack.c.l.b16 %v1141
      %v1181 = vunpack.c.l.b16 %v1142
      %v1182 = vunpack.c.l.b16 %v1143
      %v1183 = vunpack.c.l.b16 %v1144
      %v1184 = vunpack.c.l.b16 %v1145
      %v1185 = vunpack.c.l.b16 %v1146
      %v1186 = vunpack.c.l.b16 %v1147
      %v1187 = vunpack.c.l.b16 %v1148
      %v1188 = vunpack.c.l.b16 %v1149
      %v1189 = vunpack.c.l.b16 %v1150
      %v1190 = vunpack.c.l.b16 %v1151
      %v1191 = vunpack.c.l.b16 %v1152
      %v1192 = vpack.c.b16 %v1177, %v1176
      %v1193 = vpack.c.b16 %v1179, %v1178
      %v1194 = vpack.c.b16 %v1181, %v1180
      %v1195 = vpack.c.b16 %v1183, %v1182
      %v1196 = vpack.c.b16 %v1185, %v1184
      %v1197 = vpack.c.b16 %v1187, %v1186
      %v1198 = vpack.c.b16 %v1189, %v1188
      %v1199 = vpack.c.b16 %v1191, %v1190
      %1208 = vmatprep.subr.bf16.mxu0 0
      %1209 = vmatpush1.bf16.msra.mxu0 %v1199
      %1210 = vmatprep.subr.bf16.mxu0 0
      %1211 = vmatpush1.bf16.msra.mxu0 %v1198
      %1212 = vmatprep.subr.bf16.mxu0 0
      %1213 = vmatpush1.bf16.msra.mxu0 %v1197
      %1214 = vmatprep.subr.bf16.mxu0 0
      %1215 = vmatpush1.bf16.msra.mxu0 %v1196
      %1216 = vmatprep.subr.bf16.mxu0 0
      %1217 = vmatpush1.bf16.msra.mxu0 %v1195
      %1218 = vmatprep.subr.bf16.mxu0 0
      %1219 = vmatpush1.bf16.msra.mxu0 %v1194
      %1220 = vmatprep.subr.bf16.mxu0 0
      %1221 = vmatpush1.bf16.msra.mxu0 %v1193
      %1222 = vmatprep.subr.bf16.mxu0 0
      %1223 = vmatpush1.bf16.msra.mxu0 %v1192
      %1224 = vmatprep.subr.bf16.mxu0 0
      %1225 = vmatpush2.bf16.msra.mxu0 0
      %1226 = vmatprep.subr.bf16.mxu0 0
      %1227 = vmatpush2.bf16.msra.mxu0 0
      %1228 = vmatprep.subr.bf16.mxu0 0
      %1229 = vmatpush2.bf16.msra.mxu0 0
      %1230 = vmatprep.subr.bf16.mxu0 0
      %1231 = vmatpush2.bf16.msra.mxu0 0
      %1232 = vmatprep.subr.bf16.mxu0 0
      %1233 = vmatpush2.bf16.msra.mxu0 0
      %1234 = vmatprep.subr.bf16.mxu0 0
      %1235 = vmatpush2.bf16.msra.mxu0 0
      %1236 = vmatprep.subr.bf16.mxu0 0
      %1237 = vmatpush2.bf16.msra.mxu0 0
      %1238 = vmatprep.subr.bf16.mxu0 0
      %1239 = vmatpush2.bf16.msra.mxu0 0
      %1240 = vmatprep.mubr.bf16.mxu0 0
      %1241 = vmatmul.mubr.bf16.gmra.mxu0 %v1121
      %v1242 = vpop.f32.mrf.mxu0
      %v1243 = vadd.f32 %v1158, %v1242
      %v1244 = vpop.f32.mrf.mxu0
      %v1245 = vpop.f32.mrf.mxu0
      %v1246 = vadd.f32 %v1158, %v1245
      %v1247 = vpop.f32.mrf.mxu0
      %1248 = vmatprep.mubr.bf16.mxu0 0
      %1249 = vmatmul.mubr.bf16.gmra.mxu0 %v1122
      %v1250 = vpop.f32.mrf.mxu0
      %v1251 = vadd.f32 %v1158, %v1250
      %v1252 = vpop.f32.mrf.mxu0
      %v1253 = vpop.f32.mrf.mxu0
      %v1254 = vadd.f32 %v1158, %v1253
      %v1255 = vpop.f32.mrf.mxu0
      %1256 = vmatprep.mubr.bf16.mxu0 0
      %1257 = vmatmul.mubr.bf16.gmra.mxu0 %v1123
      %v1258 = vpop.f32.mrf.mxu0
      %v1259 = vadd.f32 %v1158, %v1258
      %v1260 = vpop.f32.mrf.mxu0
      %v1261 = vpop.f32.mrf.mxu0
      %v1262 = vadd.f32 %v1158, %v1261
      %v1263 = vpop.f32.mrf.mxu0
      %1264 = vmatprep.mubr.bf16.mxu0 0
      %1265 = vmatmul.mubr.bf16.gmra.mxu0 %v1124
      %v1266 = vpop.f32.mrf.mxu0
      %v1267 = vadd.f32 %v1158, %v1266
      %v1268 = vpop.f32.mrf.mxu0
      %v1269 = vpop.f32.mrf.mxu0
      %v1270 = vadd.f32 %v1158, %v1269
      %v1271 = vpop.f32.mrf.mxu0
      %1272 = vmatprep.mubr.bf16.mxu0 0
      %1273 = vmatmul.mubr.bf16.gmra.mxu0 %v1125
      %v1274 = vpop.f32.mrf.mxu0
      %v1275 = vadd.f32 %v1158, %v1274
      %v1276 = vpop.f32.mrf.mxu0
      %v1277 = vpop.f32.mrf.mxu0
      %v1278 = vadd.f32 %v1158, %v1277
      %v1279 = vpop.f32.mrf.mxu0
      %1280 = vmatprep.mubr.bf16.mxu0 0
      %1281 = vmatmul.mubr.bf16.gmra.mxu0 %v1126
      %v1282 = vpop.f32.mrf.mxu0
      %v1283 = vadd.f32 %v1158, %v1282
      %v1284 = vpop.f32.mrf.mxu0
      %v1285 = vpop.f32.mrf.mxu0
      %v1286 = vadd.f32 %v1158, %v1285
      %v1287 = vpop.f32.mrf.mxu0
      %1288 = vmatprep.mubr.bf16.mxu0 0
      %1289 = vmatmul.mubr.bf16.gmra.mxu0 %v1127
      %v1290 = vpop.f32.mrf.mxu0
      %v1291 = vadd.f32 %v1158, %v1290
      %v1292 = vpop.f32.mrf.mxu0
      %v1293 = vpop.f32.mrf.mxu0
      %v1294 = vadd.f32 %v1158, %v1293
      %v1295 = vpop.f32.mrf.mxu0
      %1296 = vmatprep.mubr.bf16.mxu0 0
      %1297 = vmatmul.mubr.bf16.gmra.mxu0 %v1128
      %v1298 = vpop.f32.mrf.mxu0
      %v1299 = vadd.f32 %v1158, %v1298
      %v1300 = vpop.f32.mrf.mxu0
      %v1301 = vpop.f32.mrf.mxu0
      %v1302 = vadd.f32 %v1158, %v1301
      %v1303 = vpop.f32.mrf.mxu0
      %1304 = vmatprep.mubr.bf16.mxu0 0
      %1305 = vmatmul.mubr.bf16.gmra.mxu0 %v1129
      %v1306 = vpop.f32.mrf.mxu0
      %v1307 = vadd.f32 %v1158, %v1306
      %v1308 = vpop.f32.mrf.mxu0
      %v1309 = vpop.f32.mrf.mxu0
      %v1310 = vadd.f32 %v1158, %v1309
      %v1311 = vpop.f32.mrf.mxu0
      %1312 = vmatprep.mubr.bf16.mxu0 0
      %1313 = vmatmul.mubr.bf16.gmra.mxu0 %v1130
      %v1314 = vpop.f32.mrf.mxu0
      %v1315 = vadd.f32 %v1158, %v1314
      %v1316 = vpop.f32.mrf.mxu0
      %v1317 = vpop.f32.mrf.mxu0
      %v1318 = vadd.f32 %v1158, %v1317
      %v1319 = vpop.f32.mrf.mxu0
      %1320 = vmatprep.mubr.bf16.mxu0 0
      %1321 = vmatmul.mubr.bf16.gmra.mxu0 %v1131
      %v1322 = vpop.f32.mrf.mxu0
      %v1323 = vadd.f32 %v1158, %v1322
      %v1324 = vpop.f32.mrf.mxu0
      %v1325 = vpop.f32.mrf.mxu0
      %v1326 = vadd.f32 %v1158, %v1325
      %v1327 = vpop.f32.mrf.mxu0
      %1328 = vmatprep.mubr.bf16.mxu0 0
      %1329 = vmatmul.mubr.bf16.gmra.mxu0 %v1132
      %v1330 = vpop.f32.mrf.mxu0
      %v1331 = vadd.f32 %v1158, %v1330
      %v1332 = vpop.f32.mrf.mxu0
      %v1333 = vpop.f32.mrf.mxu0
      %v1334 = vadd.f32 %v1158, %v1333
      %v1335 = vpop.f32.mrf.mxu0
      %1336 = vmatprep.mubr.bf16.mxu0 0
      %1337 = vmatmul.mubr.bf16.gmra.mxu0 %v1133
      %v1338 = vpop.f32.mrf.mxu0
      %v1339 = vadd.f32 %v1158, %v1338
      %v1340 = vpop.f32.mrf.mxu0
      %v1341 = vpop.f32.mrf.mxu0
      %v1342 = vadd.f32 %v1158, %v1341
      %v1343 = vpop.f32.mrf.mxu0
      %1344 = vmatprep.mubr.bf16.mxu0 0
      %1345 = vmatmul.mubr.bf16.gmra.mxu0 %v1134
      %v1346 = vpop.f32.mrf.mxu0
      %v1347 = vadd.f32 %v1158, %v1346
      %v1348 = vpop.f32.mrf.mxu0
      %v1349 = vpop.f32.mrf.mxu0
      %v1350 = vadd.f32 %v1158, %v1349
      %v1351 = vpop.f32.mrf.mxu0
      %1352 = vmatprep.mubr.bf16.mxu0 0
      %1353 = vmatmul.mubr.bf16.gmra.mxu0 %v1135
      %v1354 = vpop.f32.mrf.mxu0
      %v1355 = vadd.f32 %v1158, %v1354
      %v1356 = vpop.f32.mrf.mxu0
      %v1357 = vpop.f32.mrf.mxu0
      %v1358 = vadd.f32 %v1158, %v1357
      %v1359 = vpop.f32.mrf.mxu0
      %1360 = vmatprep.mubr.bf16.mxu0 0
      %1361 = vmatmul.mubr.bf16.gmra.mxu0 %v1136
      %v1362 = vpop.f32.mrf.mxu0
      %v1363 = vadd.f32 %v1158, %v1362
      %v1364 = vpop.f32.mrf.mxu0
      %v1365 = vpop.f32.mrf.mxu0
      %v1366 = vadd.f32 %v1158, %v1365
      %v1367 = vpop.f32.mrf.mxu0
      %1368 = vdwg.mxu0
      %v1369 = vmul.f32 %v1243, 1.442695
      %v1370 = vpow.pop %v1369
      %v1371 = vmul.f32 %v1246, 1.442695
      %v1372 = vpow.pop %v1371
      %v1373 = vmul.f32 %v1251, 1.442695
      %v1374 = vpow.pop %v1373
      %v1375 = vmul.f32 %v1254, 1.442695
      %v1376 = vpow.pop %v1375
      %v1377 = vmul.f32 %v1259, 1.442695
      %v1378 = vpow.pop %v1377
      %v1379 = vmul.f32 %v1262, 1.442695
      %v1380 = vpow.pop %v1379
      %v1381 = vmul.f32 %v1267, 1.442695
      %v1382 = vpow.pop %v1381
      %v1383 = vmul.f32 %v1270, 1.442695
      %v1384 = vpow.pop %v1383
      %v1385 = vmul.f32 %v1275, 1.442695
      %v1386 = vpow.pop %v1385
      %v1387 = vmul.f32 %v1278, 1.442695
      %v1388 = vpow.pop %v1387
      %v1389 = vmul.f32 %v1283, 1.442695
      %v1390 = vpow.pop %v1389
      %v1391 = vmul.f32 %v1286, 1.442695
      %v1392 = vpow.pop %v1391
      %v1393 = vmul.f32 %v1291, 1.442695
      %v1394 = vpow.pop %v1393
      %v1395 = vmul.f32 %v1294, 1.442695
      %v1396 = vpow.pop %v1395
      %v1397 = vmul.f32 %v1299, 1.442695
      %v1398 = vpow.pop %v1397
      %v1399 = vmul.f32 %v1302, 1.442695
      %v1400 = vpow.pop %v1399
      %v1401 = vmul.f32 %v1307, 1.442695
      %v1402 = vpow.pop %v1401
      %v1403 = vmul.f32 %v1310, 1.442695
      %v1404 = vpow.pop %v1403
      %v1405 = vmul.f32 %v1315, 1.442695
      %v1406 = vpow.pop %v1405
      %v1407 = vmul.f32 %v1318, 1.442695
      %v1408 = vpow.pop %v1407
      %v1409 = vmul.f32 %v1323, 1.442695
      %v1410 = vpow.pop %v1409
      %v1411 = vmul.f32 %v1326, 1.442695
      %v1412 = vpow.pop %v1411
      %v1413 = vmul.f32 %v1331, 1.442695
      %v1414 = vpow.pop %v1413
      %v1415 = vmul.f32 %v1334, 1.442695
      %v1416 = vpow.pop %v1415
      %v1417 = vmul.f32 %v1339, 1.442695
      %v1418 = vpow.pop %v1417
      %v1419 = vmul.f32 %v1342, 1.442695
      %v1420 = vpow.pop %v1419
      %v1421 = vmul.f32 %v1347, 1.442695
      %v1422 = vpow.pop %v1421
      %v1423 = vmul.f32 %v1350, 1.442695
      %v1424 = vpow.pop %v1423
      %v1425 = vmul.f32 %v1355, 1.442695
      %v1426 = vpow.pop %v1425
      %v1427 = vmul.f32 %v1358, 1.442695
      %v1428 = vpow.pop %v1427
      %v1429 = vmul.f32 %v1363, 1.442695
      %v1430 = vpow.pop %v1429
      %v1431 = vmul.f32 %v1366, 1.442695
      %v1432 = vpow.pop %v1431
      %v1433 = vmul.f32 %v283, %v1370
      %v1434 = vmul.f32 %v284, %v1372
      %v1435 = vmul.f32 %v285, %v1374
      %v1436 = vmul.f32 %v286, %v1376
      %v1437 = vmul.f32 %v287, %v1378
      %v1438 = vmul.f32 %v288, %v1380
      %v1439 = vmul.f32 %v289, %v1382
      %v1440 = vmul.f32 %v290, %v1384
      %v1441 = vmul.f32 %v291, %v1386
      %v1442 = vmul.f32 %v292, %v1388
      %v1443 = vmul.f32 %v293, %v1390
      %v1444 = vmul.f32 %v294, %v1392
      %v1445 = vmul.f32 %v295, %v1394
      %v1446 = vmul.f32 %v296, %v1396
      %v1447 = vmul.f32 %v297, %v1398
      %v1448 = vmul.f32 %v298, %v1400
      %v1449 = vmul.f32 %v299, %v1402
      %v1450 = vmul.f32 %v300, %v1404
      %v1451 = vmul.f32 %v301, %v1406
      %v1452 = vmul.f32 %v302, %v1408
      %v1453 = vmul.f32 %v303, %v1410
      %v1454 = vmul.f32 %v304, %v1412
      %v1455 = vmul.f32 %v305, %v1414
      %v1456 = vmul.f32 %v306, %v1416
      %v1457 = vmul.f32 %v307, %v1418
      %v1458 = vmul.f32 %v308, %v1420
      %v1459 = vmul.f32 %v309, %v1422
      %v1460 = vmul.f32 %v310, %v1424
      %v1461 = vmul.f32 %v311, %v1426
      %v1462 = vmul.f32 %v312, %v1428
      %v1463 = vmul.f32 %v313, %v1430
      %v1464 = vmul.f32 %v314, %v1432
      %1497 = vrot.lane.b32.xlu0 %v1433, 120
      %v1498 = vpop.permute.xlu0 %1497
      %1499 = vrot.lane.b32.xlu0 %v1434, 120
      %v1500 = vpop.permute.xlu0 %1499
      %1501 = vrot.lane.b32.xlu0 %v1435, 120
      %v1502 = vpop.permute.xlu0 %1501
      %1503 = vrot.lane.b32.xlu0 %v1436, 120
      %v1504 = vpop.permute.xlu0 %1503
      %1505 = vrot.lane.b32.xlu0 %v1437, 120
      %v1506 = vpop.permute.xlu0 %1505
      %1507 = vrot.lane.b32.xlu0 %v1438, 120
      %v1508 = vpop.permute.xlu0 %1507
      %1509 = vrot.lane.b32.xlu0 %v1439, 120
      %v1510 = vpop.permute.xlu0 %1509
      %1511 = vrot.lane.b32.xlu0 %v1440, 120
      %v1512 = vpop.permute.xlu0 %1511
      %1513 = vrot.lane.b32.xlu0 %v1441, 120
      %v1514 = vpop.permute.xlu0 %1513
      %1515 = vrot.lane.b32.xlu0 %v1442, 120
      %v1516 = vpop.permute.xlu0 %1515
      %1517 = vrot.lane.b32.xlu0 %v1443, 120
      %v1518 = vpop.permute.xlu0 %1517
      %1519 = vrot.lane.b32.xlu0 %v1444, 120
      %v1520 = vpop.permute.xlu0 %1519
      %1521 = vrot.lane.b32.xlu0 %v1445, 120
      %v1522 = vpop.permute.xlu0 %1521
      %1523 = vrot.lane.b32.xlu0 %v1446, 120
      %v1524 = vpop.permute.xlu0 %1523
      %1525 = vrot.lane.b32.xlu0 %v1447, 120
      %v1526 = vpop.permute.xlu0 %1525
      %1527 = vrot.lane.b32.xlu0 %v1448, 120
      %v1528 = vpop.permute.xlu0 %1527
      %1529 = vrot.lane.b32.xlu0 %v1449, 120
      %v1530 = vpop.permute.xlu0 %1529
      %1531 = vrot.lane.b32.xlu0 %v1450, 120
      %v1532 = vpop.permute.xlu0 %1531
      %1533 = vrot.lane.b32.xlu0 %v1451, 120
      %v1534 = vpop.permute.xlu0 %1533
      %1535 = vrot.lane.b32.xlu0 %v1452, 120
      %v1536 = vpop.permute.xlu0 %1535
      %1537 = vrot.lane.b32.xlu0 %v1453, 120
      %v1538 = vpop.permute.xlu0 %1537
      %1539 = vrot.lane.b32.xlu0 %v1454, 120
      %v1540 = vpop.permute.xlu0 %1539
      %1541 = vrot.lane.b32.xlu0 %v1455, 120
      %v1542 = vpop.permute.xlu0 %1541
      %1543 = vrot.lane.b32.xlu0 %v1456, 120
      %v1544 = vpop.permute.xlu0 %1543
      %1545 = vrot.lane.b32.xlu0 %v1457, 120
      %v1546 = vpop.permute.xlu0 %1545
      %1547 = vrot.lane.b32.xlu0 %v1458, 120
      %v1548 = vpop.permute.xlu0 %1547
      %1549 = vrot.lane.b32.xlu0 %v1459, 120
      %v1550 = vpop.permute.xlu0 %1549
      %1551 = vrot.lane.b32.xlu0 %v1460, 120
      %v1552 = vpop.permute.xlu0 %1551
      %1553 = vrot.lane.b32.xlu0 %v1461, 120
      %v1554 = vpop.permute.xlu0 %1553
      %1555 = vrot.lane.b32.xlu0 %v1462, 120
      %v1556 = vpop.permute.xlu0 %1555
      %1557 = vrot.lane.b32.xlu0 %v1463, 120
      %v1558 = vpop.permute.xlu0 %1557
      %1559 = vrot.lane.b32.xlu0 %v1464, 120
      %v1560 = vpop.permute.xlu0 %1559
      %v1593 = vadd.f32 %v1243, %v1498
      %v1594 = vadd.f32 %v1246, %v1500
      %v1595 = vadd.f32 %v1251, %v1502
      %v1596 = vadd.f32 %v1254, %v1504
      %v1597 = vadd.f32 %v1259, %v1506
      %v1598 = vadd.f32 %v1262, %v1508
      %v1599 = vadd.f32 %v1267, %v1510
      %v1600 = vadd.f32 %v1270, %v1512
      %v1601 = vadd.f32 %v1275, %v1514
      %v1602 = vadd.f32 %v1278, %v1516
      %v1603 = vadd.f32 %v1283, %v1518
      %v1604 = vadd.f32 %v1286, %v1520
      %v1605 = vadd.f32 %v1291, %v1522
      %v1606 = vadd.f32 %v1294, %v1524
      %v1607 = vadd.f32 %v1299, %v1526
      %v1608 = vadd.f32 %v1302, %v1528
      %v1609 = vadd.f32 %v1307, %v1530
      %v1610 = vadd.f32 %v1310, %v1532
      %v1611 = vadd.f32 %v1315, %v1534
      %v1612 = vadd.f32 %v1318, %v1536
      %v1613 = vadd.f32 %v1323, %v1538
      %v1614 = vadd.f32 %v1326, %v1540
      %v1615 = vadd.f32 %v1331, %v1542
      %v1616 = vadd.f32 %v1334, %v1544
      %v1617 = vadd.f32 %v1339, %v1546
      %v1618 = vadd.f32 %v1342, %v1548
      %v1619 = vadd.f32 %v1347, %v1550
      %v1620 = vadd.f32 %v1350, %v1552
      %v1621 = vadd.f32 %v1355, %v1554
      %v1622 = vadd.f32 %v1358, %v1556
      %v1623 = vadd.f32 %v1363, %v1558
      %v1624 = vadd.f32 %v1366, %v1560
      %v1625 = vpack.c.bf16 %v1594, %v1593
      %v1626 = vpack.c.bf16 %v1596, %v1595
      %v1627 = vpack.c.bf16 %v1598, %v1597
      %v1628 = vpack.c.bf16 %v1600, %v1599
      %v1629 = vpack.c.bf16 %v1602, %v1601
      %v1630 = vpack.c.bf16 %v1604, %v1603
      %v1631 = vpack.c.bf16 %v1606, %v1605
      %v1632 = vpack.c.bf16 %v1608, %v1607
      %v1633 = vpack.c.bf16 %v1610, %v1609
      %v1634 = vpack.c.bf16 %v1612, %v1611
      %v1635 = vpack.c.bf16 %v1614, %v1613
      %v1636 = vpack.c.bf16 %v1616, %v1615
      %v1637 = vpack.c.bf16 %v1618, %v1617
      %v1638 = vpack.c.bf16 %v1620, %v1619
      %v1639 = vpack.c.bf16 %v1622, %v1621
      %v1640 = vpack.c.bf16 %v1624, %v1623
      %s1641 = scalar_lea.vmem %s1, 4
      %v1642 = vld [vmem:[%s1641] sm:$0xf]
      %s1643 = scalar_lea.vmem %s2, 1
      %v1644 = vld [vmem:[%s1643] sm:$0x1]
      %v1646 = vlaneseq
      %v1647 = vshrl.u32 %v1646, 7
      %v1648 = vsub.s32 0, %v1647
      %v1649 = vrot.slane %v1644, %v1648
      %v1652 = vsel %vm339, %v1625, 0
      %v1655 = vsel %vm339, %v1626, 0
      %v1658 = vsel %vm339, %v1627, 0
      %v1661 = vsel %vm339, %v1628, 0
      %v1664 = vsel %vm339, %v1629, 0
      %v1667 = vsel %vm339, %v1630, 0
      %v1670 = vsel %vm339, %v1631, 0
      %v1673 = vsel %vm339, %v1632, 0
      %v1676 = vsel %vm339, %v1633, 0
      %v1679 = vsel %vm339, %v1634, 0
      %v1682 = vsel %vm339, %v1635, 0
      %v1685 = vsel %vm339, %v1636, 0
      %v1688 = vsel %vm339, %v1637, 0
      %v1691 = vsel %vm339, %v1638, 0
      %v1694 = vsel %vm339, %v1639, 0
      %v1697 = vsel %vm339, %v1640, 0
      %v1700 = vsel %vm388, %v1642, 0
      %1702 = vmatprep.subr.bf16.mxu0 0
      %1703 = vmatpush1.bf16.msra.mxu0 0
      %1704 = vmatprep.subr.bf16.mxu0 0
      %1705 = vmatpush1.bf16.msra.mxu0 0
      %1706 = vmatprep.subr.bf16.mxu0 0
      %1707 = vmatpush1.bf16.msra.mxu0 0
      %1708 = vmatprep.subr.bf16.mxu0 0
      %1709 = vmatpush1.bf16.msra.mxu0 0
      %1710 = vmatprep.subr.bf16.mxu0 0
      %1711 = vmatpush1.bf16.msra.mxu0 0
      %1712 = vmatprep.subr.bf16.mxu0 0
      %1713 = vmatpush1.bf16.msra.mxu0 0
      %1714 = vmatprep.subr.bf16.mxu0 0
      %1715 = vmatpush1.bf16.msra.mxu0 0
      %1716 = vmatprep.subr.bf16.mxu0 0
      %1717 = vmatpush1.bf16.msra.mxu0 %v1700
      %1718 = vmatprep.subr.bf16.mxu0 0
      %1719 = vmatpush2.bf16.msra.mxu0 0
      %1720 = vmatprep.subr.bf16.mxu0 0
      %1721 = vmatpush2.bf16.msra.mxu0 0
      %1722 = vmatprep.subr.bf16.mxu0 0
      %1723 = vmatpush2.bf16.msra.mxu0 0
      %1724 = vmatprep.subr.bf16.mxu0 0
      %1725 = vmatpush2.bf16.msra.mxu0 0
      %1726 = vmatprep.subr.bf16.mxu0 0
      %1727 = vmatpush2.bf16.msra.mxu0 0
      %1728 = vmatprep.subr.bf16.mxu0 0
      %1729 = vmatpush2.bf16.msra.mxu0 0
      %1730 = vmatprep.subr.bf16.mxu0 0
      %1731 = vmatpush2.bf16.msra.mxu0 0
      %1732 = vmatprep.subr.bf16.mxu0 0
      %1733 = vmatpush2.bf16.msra.mxu0 0
      %1734 = vmatprep.mubr.bf16.mxu0 0
      %1735 = vmatmul.mubr.bf16.gmra.mxu0 %v1652
      %v1736 = vpop.f32.mrf.mxu0
      %v1737 = vadd.f32 %v1649, %v1736
      %v1738 = vpop.f32.mrf.mxu0
      %v1739 = vpop.f32.mrf.mxu0
      %v1740 = vadd.f32 %v1649, %v1739
      %v1741 = vpop.f32.mrf.mxu0
      %1742 = vmatprep.mubr.bf16.mxu0 0
      %1743 = vmatmul.mubr.bf16.gmra.mxu0 %v1655
      %v1744 = vpop.f32.mrf.mxu0
      %v1745 = vadd.f32 %v1649, %v1744
      %v1746 = vpop.f32.mrf.mxu0
      %v1747 = vpop.f32.mrf.mxu0
      %v1748 = vadd.f32 %v1649, %v1747
      %v1749 = vpop.f32.mrf.mxu0
      %1750 = vmatprep.mubr.bf16.mxu0 0
      %1751 = vmatmul.mubr.bf16.gmra.mxu0 %v1658
      %v1752 = vpop.f32.mrf.mxu0
      %v1753 = vadd.f32 %v1649, %v1752
      %v1754 = vpop.f32.mrf.mxu0
      %v1755 = vpop.f32.mrf.mxu0
      %v1756 = vadd.f32 %v1649, %v1755
      %v1757 = vpop.f32.mrf.mxu0
      %1758 = vmatprep.mubr.bf16.mxu0 0
      %1759 = vmatmul.mubr.bf16.gmra.mxu0 %v1661
      %v1760 = vpop.f32.mrf.mxu0
      %v1761 = vadd.f32 %v1649, %v1760
      %v1762 = vpop.f32.mrf.mxu0
      %v1763 = vpop.f32.mrf.mxu0
      %v1764 = vadd.f32 %v1649, %v1763
      %v1765 = vpop.f32.mrf.mxu0
      %1766 = vmatprep.mubr.bf16.mxu0 0
      %1767 = vmatmul.mubr.bf16.gmra.mxu0 %v1664
      %v1768 = vpop.f32.mrf.mxu0
      %v1769 = vadd.f32 %v1649, %v1768
      %v1770 = vpop.f32.mrf.mxu0
      %v1771 = vpop.f32.mrf.mxu0
      %v1772 = vadd.f32 %v1649, %v1771
      %v1773 = vpop.f32.mrf.mxu0
      %1774 = vmatprep.mubr.bf16.mxu0 0
      %1775 = vmatmul.mubr.bf16.gmra.mxu0 %v1667
      %v1776 = vpop.f32.mrf.mxu0
      %v1777 = vadd.f32 %v1649, %v1776
      %v1778 = vpop.f32.mrf.mxu0
      %v1779 = vpop.f32.mrf.mxu0
      %v1780 = vadd.f32 %v1649, %v1779
      %v1781 = vpop.f32.mrf.mxu0
      %1782 = vmatprep.mubr.bf16.mxu0 0
      %1783 = vmatmul.mubr.bf16.gmra.mxu0 %v1670
      %v1784 = vpop.f32.mrf.mxu0
      %v1785 = vadd.f32 %v1649, %v1784
      %v1786 = vpop.f32.mrf.mxu0
      %v1787 = vpop.f32.mrf.mxu0
      %v1788 = vadd.f32 %v1649, %v1787
      %v1789 = vpop.f32.mrf.mxu0
      %1790 = vmatprep.mubr.bf16.mxu0 0
      %1791 = vmatmul.mubr.bf16.gmra.mxu0 %v1673
      %v1792 = vpop.f32.mrf.mxu0
      %v1793 = vadd.f32 %v1649, %v1792
      %v1794 = vpop.f32.mrf.mxu0
      %v1795 = vpop.f32.mrf.mxu0
      %v1796 = vadd.f32 %v1649, %v1795
      %v1797 = vpop.f32.mrf.mxu0
      %1798 = vmatprep.mubr.bf16.mxu0 0
      %1799 = vmatmul.mubr.bf16.gmra.mxu0 %v1676
      %v1800 = vpop.f32.mrf.mxu0
      %v1801 = vadd.f32 %v1649, %v1800
      %v1802 = vpop.f32.mrf.mxu0
      %v1803 = vpop.f32.mrf.mxu0
      %v1804 = vadd.f32 %v1649, %v1803
      %v1805 = vpop.f32.mrf.mxu0
      %1806 = vmatprep.mubr.bf16.mxu0 0
      %1807 = vmatmul.mubr.bf16.gmra.mxu0 %v1679
      %v1808 = vpop.f32.mrf.mxu0
      %v1809 = vadd.f32 %v1649, %v1808
      %v1810 = vpop.f32.mrf.mxu0
      %v1811 = vpop.f32.mrf.mxu0
      %v1812 = vadd.f32 %v1649, %v1811
      %v1813 = vpop.f32.mrf.mxu0
      %1814 = vmatprep.mubr.bf16.mxu0 0
      %1815 = vmatmul.mubr.bf16.gmra.mxu0 %v1682
      %v1816 = vpop.f32.mrf.mxu0
      %v1817 = vadd.f32 %v1649, %v1816
      %v1818 = vpop.f32.mrf.mxu0
      %v1819 = vpop.f32.mrf.mxu0
      %v1820 = vadd.f32 %v1649, %v1819
      %v1821 = vpop.f32.mrf.mxu0
      %1822 = vmatprep.mubr.bf16.mxu0 0
      %1823 = vmatmul.mubr.bf16.gmra.mxu0 %v1685
      %v1824 = vpop.f32.mrf.mxu0
      %v1825 = vadd.f32 %v1649, %v1824
      %v1826 = vpop.f32.mrf.mxu0
      %v1827 = vpop.f32.mrf.mxu0
      %v1828 = vadd.f32 %v1649, %v1827
      %v1829 = vpop.f32.mrf.mxu0
      %1830 = vmatprep.mubr.bf16.mxu0 0
      %1831 = vmatmul.mubr.bf16.gmra.mxu0 %v1688
      %v1832 = vpop.f32.mrf.mxu0
      %v1833 = vadd.f32 %v1649, %v1832
      %v1834 = vpop.f32.mrf.mxu0
      %v1835 = vpop.f32.mrf.mxu0
      %v1836 = vadd.f32 %v1649, %v1835
      %v1837 = vpop.f32.mrf.mxu0
      %1838 = vmatprep.mubr.bf16.mxu0 0
      %1839 = vmatmul.mubr.bf16.gmra.mxu0 %v1691
      %v1840 = vpop.f32.mrf.mxu0
      %v1841 = vadd.f32 %v1649, %v1840
      %v1842 = vpop.f32.mrf.mxu0
      %v1843 = vpop.f32.mrf.mxu0
      %v1844 = vadd.f32 %v1649, %v1843
      %v1845 = vpop.f32.mrf.mxu0
      %1846 = vmatprep.mubr.bf16.mxu0 0
      %1847 = vmatmul.mubr.bf16.gmra.mxu0 %v1694
      %v1848 = vpop.f32.mrf.mxu0
      %v1849 = vadd.f32 %v1649, %v1848
      %v1850 = vpop.f32.mrf.mxu0
      %v1851 = vpop.f32.mrf.mxu0
      %v1852 = vadd.f32 %v1649, %v1851
      %v1853 = vpop.f32.mrf.mxu0
      %1854 = vmatprep.mubr.bf16.mxu0 0
      %1855 = vmatmul.mubr.bf16.gmra.mxu0 %v1697
      %v1856 = vpop.f32.mrf.mxu0
      %v1857 = vadd.f32 %v1649, %v1856
      %v1858 = vpop.f32.mrf.mxu0
      %v1859 = vpop.f32.mrf.mxu0
      %v1860 = vadd.f32 %v1649, %v1859
      %v1861 = vpop.f32.mrf.mxu0
      %1862 = vdwg.mxu0
      %v1863 = vmul.f32 %v1737, 0.5
      %v1864 = vmul.f32 %v1740, 0.5
      %v1865 = vmul.f32 %v1745, 0.5
      %v1866 = vmul.f32 %v1748, 0.5
      %v1867 = vmul.f32 %v1753, 0.5
      %v1868 = vmul.f32 %v1756, 0.5
      %v1869 = vmul.f32 %v1761, 0.5
      %v1870 = vmul.f32 %v1764, 0.5
      %v1871 = vmul.f32 %v1769, 0.5
      %v1872 = vmul.f32 %v1772, 0.5
      %v1873 = vmul.f32 %v1777, 0.5
      %v1874 = vmul.f32 %v1780, 0.5
      %v1875 = vmul.f32 %v1785, 0.5
      %v1876 = vmul.f32 %v1788, 0.5
      %v1877 = vmul.f32 %v1793, 0.5
      %v1878 = vmul.f32 %v1796, 0.5
      %v1879 = vmul.f32 %v1801, 0.5
      %v1880 = vmul.f32 %v1804, 0.5
      %v1881 = vmul.f32 %v1809, 0.5
      %v1882 = vmul.f32 %v1812, 0.5
      %v1883 = vmul.f32 %v1817, 0.5
      %v1884 = vmul.f32 %v1820, 0.5
      %v1885 = vmul.f32 %v1825, 0.5
      %v1886 = vmul.f32 %v1828, 0.5
      %v1887 = vmul.f32 %v1833, 0.5
      %v1888 = vmul.f32 %v1836, 0.5
      %v1889 = vmul.f32 %v1841, 0.5
      %v1890 = vmul.f32 %v1844, 0.5
      %v1891 = vmul.f32 %v1849, 0.5
      %v1892 = vmul.f32 %v1852, 0.5
      %v1893 = vmul.f32 %v1857, 0.5
      %v1894 = vmul.f32 %v1860, 0.5
      %v1895 = vmul.f32 %v1737, 0.70710677
      %v1896 = vmul.f32 %v1740, 0.70710677
      %v1897 = vmul.f32 %v1745, 0.70710677
      %v1898 = vmul.f32 %v1748, 0.70710677
      %v1899 = vmul.f32 %v1753, 0.70710677
      %v1900 = vmul.f32 %v1756, 0.70710677
      %v1901 = vmul.f32 %v1761, 0.70710677
      %v1902 = vmul.f32 %v1764, 0.70710677
      %v1903 = vmul.f32 %v1769, 0.70710677
      %v1904 = vmul.f32 %v1772, 0.70710677
      %v1905 = vmul.f32 %v1777, 0.70710677
      %v1906 = vmul.f32 %v1780, 0.70710677
      %v1907 = vmul.f32 %v1785, 0.70710677
      %v1908 = vmul.f32 %v1788, 0.70710677
      %v1909 = vmul.f32 %v1793, 0.70710677
      %v1910 = vmul.f32 %v1796, 0.70710677
      %v1911 = vmul.f32 %v1801, 0.70710677
      %v1912 = vmul.f32 %v1804, 0.70710677
      %v1913 = vmul.f32 %v1809, 0.70710677
      %v1914 = vmul.f32 %v1812, 0.70710677
      %v1915 = vmul.f32 %v1817, 0.70710677
      %v1916 = vmul.f32 %v1820, 0.70710677
      %v1917 = vmul.f32 %v1825, 0.70710677
      %v1918 = vmul.f32 %v1828, 0.70710677
      %v1919 = vmul.f32 %v1833, 0.70710677
      %v1920 = vmul.f32 %v1836, 0.70710677
      %v1921 = vmul.f32 %v1841, 0.70710677
      %v1922 = vmul.f32 %v1844, 0.70710677
      %v1923 = vmul.f32 %v1849, 0.70710677
      %v1924 = vmul.f32 %v1852, 0.70710677
      %v1925 = vmul.f32 %v1857, 0.70710677
      %v1926 = vmul.f32 %v1860, 0.70710677
      %v1927 = verf.f32.pop %v1895
      %v1928 = verf.f32.pop %v1896
      %v1929 = verf.f32.pop %v1897
      %v1930 = verf.f32.pop %v1898
      %v1931 = verf.f32.pop %v1899
      %v1932 = verf.f32.pop %v1900
      %v1933 = verf.f32.pop %v1901
      %v1934 = verf.f32.pop %v1902
      %v1935 = verf.f32.pop %v1903
      %v1936 = verf.f32.pop %v1904
      %v1937 = verf.f32.pop %v1905
      %v1938 = verf.f32.pop %v1906
      %v1939 = verf.f32.pop %v1907
      %v1940 = verf.f32.pop %v1908
      %v1941 = verf.f32.pop %v1909
      %v1942 = verf.f32.pop %v1910
      %v1943 = verf.f32.pop %v1911
      %v1944 = verf.f32.pop %v1912
      %v1945 = verf.f32.pop %v1913
      %v1946 = verf.f32.pop %v1914
      %v1947 = verf.f32.pop %v1915
      %v1948 = verf.f32.pop %v1916
      %v1949 = verf.f32.pop %v1917
      %v1950 = verf.f32.pop %v1918
      %v1951 = verf.f32.pop %v1919
      %v1952 = verf.f32.pop %v1920
      %v1953 = verf.f32.pop %v1921
      %v1954 = verf.f32.pop %v1922
      %v1955 = verf.f32.pop %v1923
      %v1956 = verf.f32.pop %v1924
      %v1957 = verf.f32.pop %v1925
      %v1958 = verf.f32.pop %v1926
      %v1959 = vadd.f32 %v1927, 1.0
      %v1960 = vadd.f32 %v1928, 1.0
      %v1961 = vadd.f32 %v1929, 1.0
      %v1962 = vadd.f32 %v1930, 1.0
      %v1963 = vadd.f32 %v1931, 1.0
      %v1964 = vadd.f32 %v1932, 1.0
      %v1965 = vadd.f32 %v1933, 1.0
      %v1966 = vadd.f32 %v1934, 1.0
      %v1967 = vadd.f32 %v1935, 1.0
      %v1968 = vadd.f32 %v1936, 1.0
      %v1969 = vadd.f32 %v1937, 1.0
      %v1970 = vadd.f32 %v1938, 1.0
      %v1971 = vadd.f32 %v1939, 1.0
      %v1972 = vadd.f32 %v1940, 1.0
      %v1973 = vadd.f32 %v1941, 1.0
      %v1974 = vadd.f32 %v1942, 1.0
      %v1975 = vadd.f32 %v1943, 1.0
      %v1976 = vadd.f32 %v1944, 1.0
      %v1977 = vadd.f32 %v1945, 1.0
      %v1978 = vadd.f32 %v1946, 1.0
      %v1979 = vadd.f32 %v1947, 1.0
      %v1980 = vadd.f32 %v1948, 1.0
      %v1981 = vadd.f32 %v1949, 1.0
      %v1982 = vadd.f32 %v1950, 1.0
      %v1983 = vadd.f32 %v1951, 1.0
      %v1984 = vadd.f32 %v1952, 1.0
      %v1985 = vadd.f32 %v1953, 1.0
      %v1986 = vadd.f32 %v1954, 1.0
      %v1987 = vadd.f32 %v1955, 1.0
      %v1988 = vadd.f32 %v1956, 1.0
      %v1989 = vadd.f32 %v1957, 1.0
      %v1990 = vadd.f32 %v1958, 1.0
      %v1991 = vmul.f32 %v1863, %v1959
      %v1992 = vmul.f32 %v1864, %v1960
      %v1993 = vmul.f32 %v1865, %v1961
      %v1994 = vmul.f32 %v1866, %v1962
      %v1995 = vmul.f32 %v1867, %v1963
      %v1996 = vmul.f32 %v1868, %v1964
      %v1997 = vmul.f32 %v1869, %v1965
      %v1998 = vmul.f32 %v1870, %v1966
      %v1999 = vmul.f32 %v1871, %v1967
      %v2000 = vmul.f32 %v1872, %v1968
      %v2001 = vmul.f32 %v1873, %v1969
      %v2002 = vmul.f32 %v1874, %v1970
      %v2003 = vmul.f32 %v1875, %v1971
      %v2004 = vmul.f32 %v1876, %v1972
      %v2005 = vmul.f32 %v1877, %v1973
      %v2006 = vmul.f32 %v1878, %v1974
      %v2007 = vmul.f32 %v1879, %v1975
      %v2008 = vmul.f32 %v1880, %v1976
      %v2009 = vmul.f32 %v1881, %v1977
      %v2010 = vmul.f32 %v1882, %v1978
      %v2011 = vmul.f32 %v1883, %v1979
      %v2012 = vmul.f32 %v1884, %v1980
      %v2013 = vmul.f32 %v1885, %v1981
      %v2014 = vmul.f32 %v1886, %v1982
      %v2015 = vmul.f32 %v1887, %v1983
      %v2016 = vmul.f32 %v1888, %v1984
      %v2017 = vmul.f32 %v1889, %v1985
      %v2018 = vmul.f32 %v1890, %v1986
      %v2019 = vmul.f32 %v1891, %v1987
      %v2020 = vmul.f32 %v1892, %v1988
      %v2021 = vmul.f32 %v1893, %v1989
      %v2022 = vmul.f32 %v1894, %v1990
      %v2023 = vpack.c.bf16 %v1992, %v1991
      %v2024 = vpack.c.bf16 %v1994, %v1993
      %v2025 = vpack.c.bf16 %v1996, %v1995
      %v2026 = vpack.c.bf16 %v1998, %v1997
      %v2027 = vpack.c.bf16 %v2000, %v1999
      %v2028 = vpack.c.bf16 %v2002, %v2001
      %v2029 = vpack.c.bf16 %v2004, %v2003
      %v2030 = vpack.c.bf16 %v2006, %v2005
      %v2031 = vpack.c.bf16 %v2008, %v2007
      %v2032 = vpack.c.bf16 %v2010, %v2009
      %v2033 = vpack.c.bf16 %v2012, %v2011
      %v2034 = vpack.c.bf16 %v2014, %v2013
      %v2035 = vpack.c.bf16 %v2016, %v2015
      %v2036 = vpack.c.bf16 %v2018, %v2017
      %v2037 = vpack.c.bf16 %v2020, %v2019
      %v2038 = vpack.c.bf16 %v2022, %v2021
      %s2039 = scalar_lea.vmem %s3, 64
      %v2040 = vld [vmem:[%s2039] sm:$0xf]
      %v2041 = vld [vmem:[%s2039 + $0x4] sm:$0xf]
      %v2042 = vld [vmem:[%s2039 + $0x8] sm:$0xf]
      %v2043 = vld [vmem:[%s2039 + $0xc] sm:$0xf]
      %v2044 = vld [vmem:[%s2039 + $0x10] sm:$0xf]
      %v2045 = vld [vmem:[%s2039 + $0x14] sm:$0xf]
      %v2046 = vld [vmem:[%s2039 + $0x18] sm:$0xf]
      %v2047 = vld [vmem:[%s2039 + $0x1c] sm:$0xf]
      %v2048 = vld [vmem:[%s2039 + $0x20] sm:$0xf]
      %v2049 = vld [vmem:[%s2039 + $0x24] sm:$0xf]
      %v2050 = vld [vmem:[%s2039 + $0x28] sm:$0xf]
      %v2051 = vld [vmem:[%s2039 + $0x2c] sm:$0xf]
      %v2052 = vld [vmem:[%s2039 + $0x30] sm:$0xf]
      %v2053 = vld [vmem:[%s2039 + $0x34] sm:$0xf]
      %v2054 = vld [vmem:[%s2039 + $0x38] sm:$0xf]
      %v2055 = vld [vmem:[%s2039 + $0x3c] sm:$0xf]
      %s2056 = scalar_lea.vmem %s4, 1
      %v2057 = vld [vmem:[%s2056] sm:$0x1]
      %v2059 = vlaneseq
      %v2060 = vshrl.u32 %v2059, 7
      %v2061 = vsub.s32 0, %v2060
      %v2062 = vrot.slane %v2057, %v2061
      %v2080 = vunpack.c.l.b16 %v2040
      %v2081 = vunpack.c.l.b16 %v2041
      %v2082 = vunpack.c.l.b16 %v2042
      %v2083 = vunpack.c.l.b16 %v2043
      %v2084 = vunpack.c.l.b16 %v2044
      %v2085 = vunpack.c.l.b16 %v2045
      %v2086 = vunpack.c.l.b16 %v2046
      %v2087 = vunpack.c.l.b16 %v2047
      %v2088 = vunpack.c.l.b16 %v2048
      %v2089 = vunpack.c.l.b16 %v2049
      %v2090 = vunpack.c.l.b16 %v2050
      %v2091 = vunpack.c.l.b16 %v2051
      %v2092 = vunpack.c.l.b16 %v2052
      %v2093 = vunpack.c.l.b16 %v2053
      %v2094 = vunpack.c.l.b16 %v2054
      %v2095 = vunpack.c.l.b16 %v2055
      %v2096 = vpack.c.b16 %v2081, %v2080
      %v2097 = vpack.c.b16 %v2083, %v2082
      %v2098 = vpack.c.b16 %v2085, %v2084
      %v2099 = vpack.c.b16 %v2087, %v2086
      %v2100 = vpack.c.b16 %v2089, %v2088
      %v2101 = vpack.c.b16 %v2091, %v2090
      %v2102 = vpack.c.b16 %v2093, %v2092
      %v2103 = vpack.c.b16 %v2095, %v2094
      %2112 = vmatprep.subr.bf16.mxu0 0
      %2113 = vmatpush1.bf16.msra.mxu0 %v2103
      %2114 = vmatprep.subr.bf16.mxu0 0
      %2115 = vmatpush1.bf16.msra.mxu0 %v2102
      %2116 = vmatprep.subr.bf16.mxu0 0
      %2117 = vmatpush1.bf16.msra.mxu0 %v2101
      %2118 = vmatprep.subr.bf16.mxu0 0
      %2119 = vmatpush1.bf16.msra.mxu0 %v2100
      %2120 = vmatprep.subr.bf16.mxu0 0
      %2121 = vmatpush1.bf16.msra.mxu0 %v2099
      %2122 = vmatprep.subr.bf16.mxu0 0
      %2123 = vmatpush1.bf16.msra.mxu0 %v2098
      %2124 = vmatprep.subr.bf16.mxu0 0
      %2125 = vmatpush1.bf16.msra.mxu0 %v2097
      %2126 = vmatprep.subr.bf16.mxu0 0
      %2127 = vmatpush1.bf16.msra.mxu0 %v2096
      %2128 = vmatprep.subr.bf16.mxu0 0
      %2129 = vmatpush2.bf16.msra.mxu0 0
      %2130 = vmatprep.subr.bf16.mxu0 0
      %2131 = vmatpush2.bf16.msra.mxu0 0
      %2132 = vmatprep.subr.bf16.mxu0 0
      %2133 = vmatpush2.bf16.msra.mxu0 0
      %2134 = vmatprep.subr.bf16.mxu0 0
      %2135 = vmatpush2.bf16.msra.mxu0 0
      %2136 = vmatprep.subr.bf16.mxu0 0
      %2137 = vmatpush2.bf16.msra.mxu0 0
      %2138 = vmatprep.subr.bf16.mxu0 0
      %2139 = vmatpush2.bf16.msra.mxu0 0
      %2140 = vmatprep.subr.bf16.mxu0 0
      %2141 = vmatpush2.bf16.msra.mxu0 0
      %2142 = vmatprep.subr.bf16.mxu0 0
      %2143 = vmatpush2.bf16.msra.mxu0 0
      %2144 = vmatprep.mubr.bf16.mxu0 0
      %2145 = vmatmul.mubr.bf16.gmra.mxu0 %v2023
      %v2146 = vpop.f32.mrf.mxu0
      %v2147 = vadd.f32 %v2062, %v2146
      %v2148 = vpop.f32.mrf.mxu0
      %v2149 = vpop.f32.mrf.mxu0
      %v2150 = vadd.f32 %v2062, %v2149
      %v2151 = vpop.f32.mrf.mxu0
      %2152 = vmatprep.mubr.bf16.mxu0 0
      %2153 = vmatmul.mubr.bf16.gmra.mxu0 %v2024
      %v2154 = vpop.f32.mrf.mxu0
      %v2155 = vadd.f32 %v2062, %v2154
      %v2156 = vpop.f32.mrf.mxu0
      %v2157 = vpop.f32.mrf.mxu0
      %v2158 = vadd.f32 %v2062, %v2157
      %v2159 = vpop.f32.mrf.mxu0
      %2160 = vmatprep.mubr.bf16.mxu0 0
      %2161 = vmatmul.mubr.bf16.gmra.mxu0 %v2025
      %v2162 = vpop.f32.mrf.mxu0
      %v2163 = vadd.f32 %v2062, %v2162
      %v2164 = vpop.f32.mrf.mxu0
      %v2165 = vpop.f32.mrf.mxu0
      %v2166 = vadd.f32 %v2062, %v2165
      %v2167 = vpop.f32.mrf.mxu0
      %2168 = vmatprep.mubr.bf16.mxu0 0
      %2169 = vmatmul.mubr.bf16.gmra.mxu0 %v2026
      %v2170 = vpop.f32.mrf.mxu0
      %v2171 = vadd.f32 %v2062, %v2170
      %v2172 = vpop.f32.mrf.mxu0
      %v2173 = vpop.f32.mrf.mxu0
      %v2174 = vadd.f32 %v2062, %v2173
      %v2175 = vpop.f32.mrf.mxu0
      %2176 = vmatprep.mubr.bf16.mxu0 0
      %2177 = vmatmul.mubr.bf16.gmra.mxu0 %v2027
      %v2178 = vpop.f32.mrf.mxu0
      %v2179 = vadd.f32 %v2062, %v2178
      %v2180 = vpop.f32.mrf.mxu0
      %v2181 = vpop.f32.mrf.mxu0
      %v2182 = vadd.f32 %v2062, %v2181
      %v2183 = vpop.f32.mrf.mxu0
      %2184 = vmatprep.mubr.bf16.mxu0 0
      %2185 = vmatmul.mubr.bf16.gmra.mxu0 %v2028
      %v2186 = vpop.f32.mrf.mxu0
      %v2187 = vadd.f32 %v2062, %v2186
      %v2188 = vpop.f32.mrf.mxu0
      %v2189 = vpop.f32.mrf.mxu0
      %v2190 = vadd.f32 %v2062, %v2189
      %v2191 = vpop.f32.mrf.mxu0
      %2192 = vmatprep.mubr.bf16.mxu0 0
      %2193 = vmatmul.mubr.bf16.gmra.mxu0 %v2029
      %v2194 = vpop.f32.mrf.mxu0
      %v2195 = vadd.f32 %v2062, %v2194
      %v2196 = vpop.f32.mrf.mxu0
      %v2197 = vpop.f32.mrf.mxu0
      %v2198 = vadd.f32 %v2062, %v2197
      %v2199 = vpop.f32.mrf.mxu0
      %2200 = vmatprep.mubr.bf16.mxu0 0
      %2201 = vmatmul.mubr.bf16.gmra.mxu0 %v2030
      %v2202 = vpop.f32.mrf.mxu0
      %v2203 = vadd.f32 %v2062, %v2202
      %v2204 = vpop.f32.mrf.mxu0
      %v2205 = vpop.f32.mrf.mxu0
      %v2206 = vadd.f32 %v2062, %v2205
      %v2207 = vpop.f32.mrf.mxu0
      %2208 = vmatprep.mubr.bf16.mxu0 0
      %2209 = vmatmul.mubr.bf16.gmra.mxu0 %v2031
      %v2210 = vpop.f32.mrf.mxu0
      %v2211 = vadd.f32 %v2062, %v2210
      %v2212 = vpop.f32.mrf.mxu0
      %v2213 = vpop.f32.mrf.mxu0
      %v2214 = vadd.f32 %v2062, %v2213
      %v2215 = vpop.f32.mrf.mxu0
      %2216 = vmatprep.mubr.bf16.mxu0 0
      %2217 = vmatmul.mubr.bf16.gmra.mxu0 %v2032
      %v2218 = vpop.f32.mrf.mxu0
      %v2219 = vadd.f32 %v2062, %v2218
      %v2220 = vpop.f32.mrf.mxu0
      %v2221 = vpop.f32.mrf.mxu0
      %v2222 = vadd.f32 %v2062, %v2221
      %v2223 = vpop.f32.mrf.mxu0
      %2224 = vmatprep.mubr.bf16.mxu0 0
      %2225 = vmatmul.mubr.bf16.gmra.mxu0 %v2033
      %v2226 = vpop.f32.mrf.mxu0
      %v2227 = vadd.f32 %v2062, %v2226
      %v2228 = vpop.f32.mrf.mxu0
      %v2229 = vpop.f32.mrf.mxu0
      %v2230 = vadd.f32 %v2062, %v2229
      %v2231 = vpop.f32.mrf.mxu0
      %2232 = vmatprep.mubr.bf16.mxu0 0
      %2233 = vmatmul.mubr.bf16.gmra.mxu0 %v2034
      %v2234 = vpop.f32.mrf.mxu0
      %v2235 = vadd.f32 %v2062, %v2234
      %v2236 = vpop.f32.mrf.mxu0
      %v2237 = vpop.f32.mrf.mxu0
      %v2238 = vadd.f32 %v2062, %v2237
      %v2239 = vpop.f32.mrf.mxu0
      %2240 = vmatprep.mubr.bf16.mxu0 0
      %2241 = vmatmul.mubr.bf16.gmra.mxu0 %v2035
      %v2242 = vpop.f32.mrf.mxu0
      %v2243 = vadd.f32 %v2062, %v2242
      %v2244 = vpop.f32.mrf.mxu0
      %v2245 = vpop.f32.mrf.mxu0
      %v2246 = vadd.f32 %v2062, %v2245
      %v2247 = vpop.f32.mrf.mxu0
      %2248 = vmatprep.mubr.bf16.mxu0 0
      %2249 = vmatmul.mubr.bf16.gmra.mxu0 %v2036
      %v2250 = vpop.f32.mrf.mxu0
      %v2251 = vadd.f32 %v2062, %v2250
      %v2252 = vpop.f32.mrf.mxu0
      %v2253 = vpop.f32.mrf.mxu0
      %v2254 = vadd.f32 %v2062, %v2253
      %v2255 = vpop.f32.mrf.mxu0
      %2256 = vmatprep.mubr.bf16.mxu0 0
      %2257 = vmatmul.mubr.bf16.gmra.mxu0 %v2037
      %v2258 = vpop.f32.mrf.mxu0
      %v2259 = vadd.f32 %v2062, %v2258
      %v2260 = vpop.f32.mrf.mxu0
      %v2261 = vpop.f32.mrf.mxu0
      %v2262 = vadd.f32 %v2062, %v2261
      %v2263 = vpop.f32.mrf.mxu0
      %2264 = vmatprep.mubr.bf16.mxu0 0
      %2265 = vmatmul.mubr.bf16.gmra.mxu0 %v2038
      %v2266 = vpop.f32.mrf.mxu0
      %v2267 = vadd.f32 %v2062, %v2266
      %v2268 = vpop.f32.mrf.mxu0
      %v2269 = vpop.f32.mrf.mxu0
      %v2270 = vadd.f32 %v2062, %v2269
      %v2271 = vpop.f32.mrf.mxu0
      %2272 = vdwg.mxu0
      %v2273 = vmul.f32 %v2147, 0.5
      %v2274 = vmul.f32 %v2150, 0.5
      %v2275 = vmul.f32 %v2155, 0.5
      %v2276 = vmul.f32 %v2158, 0.5
      %v2277 = vmul.f32 %v2163, 0.5
      %v2278 = vmul.f32 %v2166, 0.5
      %v2279 = vmul.f32 %v2171, 0.5
      %v2280 = vmul.f32 %v2174, 0.5
      %v2281 = vmul.f32 %v2179, 0.5
      %v2282 = vmul.f32 %v2182, 0.5
      %v2283 = vmul.f32 %v2187, 0.5
      %v2284 = vmul.f32 %v2190, 0.5
      %v2285 = vmul.f32 %v2195, 0.5
      %v2286 = vmul.f32 %v2198, 0.5
      %v2287 = vmul.f32 %v2203, 0.5
      %v2288 = vmul.f32 %v2206, 0.5
      %v2289 = vmul.f32 %v2211, 0.5
      %v2290 = vmul.f32 %v2214, 0.5
      %v2291 = vmul.f32 %v2219, 0.5
      %v2292 = vmul.f32 %v2222, 0.5
      %v2293 = vmul.f32 %v2227, 0.5
      %v2294 = vmul.f32 %v2230, 0.5
      %v2295 = vmul.f32 %v2235, 0.5
      %v2296 = vmul.f32 %v2238, 0.5
      %v2297 = vmul.f32 %v2243, 0.5
      %v2298 = vmul.f32 %v2246, 0.5
      %v2299 = vmul.f32 %v2251, 0.5
      %v2300 = vmul.f32 %v2254, 0.5
      %v2301 = vmul.f32 %v2259, 0.5
      %v2302 = vmul.f32 %v2262, 0.5
      %v2303 = vmul.f32 %v2267, 0.5
      %v2304 = vmul.f32 %v2270, 0.5
      %v2305 = vmul.f32 %v2147, 0.70710677
      %v2306 = vmul.f32 %v2150, 0.70710677
      %v2307 = vmul.f32 %v2155, 0.70710677
      %v2308 = vmul.f32 %v2158, 0.70710677
      %v2309 = vmul.f32 %v2163, 0.70710677
      %v2310 = vmul.f32 %v2166, 0.70710677
      %v2311 = vmul.f32 %v2171, 0.70710677
      %v2312 = vmul.f32 %v2174, 0.70710677
      %v2313 = vmul.f32 %v2179, 0.70710677
      %v2314 = vmul.f32 %v2182, 0.70710677
      %v2315 = vmul.f32 %v2187, 0.70710677
      %v2316 = vmul.f32 %v2190, 0.70710677
      %v2317 = vmul.f32 %v2195, 0.70710677
      %v2318 = vmul.f32 %v2198, 0.70710677
      %v2319 = vmul.f32 %v2203, 0.70710677
      %v2320 = vmul.f32 %v2206, 0.70710677
      %v2321 = vmul.f32 %v2211, 0.70710677
      %v2322 = vmul.f32 %v2214, 0.70710677
      %v2323 = vmul.f32 %v2219, 0.70710677
      %v2324 = vmul.f32 %v2222, 0.70710677
      %v2325 = vmul.f32 %v2227, 0.70710677
      %v2326 = vmul.f32 %v2230, 0.70710677
      %v2327 = vmul.f32 %v2235, 0.70710677
      %v2328 = vmul.f32 %v2238, 0.70710677
      %v2329 = vmul.f32 %v2243, 0.70710677
      %v2330 = vmul.f32 %v2246, 0.70710677
      %v2331 = vmul.f32 %v2251, 0.70710677
      %v2332 = vmul.f32 %v2254, 0.70710677
      %v2333 = vmul.f32 %v2259, 0.70710677
      %v2334 = vmul.f32 %v2262, 0.70710677
      %v2335 = vmul.f32 %v2267, 0.70710677
      %v2336 = vmul.f32 %v2270, 0.70710677
      %v2337 = verf.f32.pop %v2305
      %v2338 = verf.f32.pop %v2306
      %v2339 = verf.f32.pop %v2307
      %v2340 = verf.f32.pop %v2308
      %v2341 = verf.f32.pop %v2309
      %v2342 = verf.f32.pop %v2310
      %v2343 = verf.f32.pop %v2311
      %v2344 = verf.f32.pop %v2312
      %v2345 = verf.f32.pop %v2313
      %v2346 = verf.f32.pop %v2314
      %v2347 = verf.f32.pop %v2315
      %v2348 = verf.f32.pop %v2316
      %v2349 = verf.f32.pop %v2317
      %v2350 = verf.f32.pop %v2318
      %v2351 = verf.f32.pop %v2319
      %v2352 = verf.f32.pop %v2320
      %v2353 = verf.f32.pop %v2321
      %v2354 = verf.f32.pop %v2322
      %v2355 = verf.f32.pop %v2323
      %v2356 = verf.f32.pop %v2324
      %v2357 = verf.f32.pop %v2325
      %v2358 = verf.f32.pop %v2326
      %v2359 = verf.f32.pop %v2327
      %v2360 = verf.f32.pop %v2328
      %v2361 = verf.f32.pop %v2329
      %v2362 = verf.f32.pop %v2330
      %v2363 = verf.f32.pop %v2331
      %v2364 = verf.f32.pop %v2332
      %v2365 = verf.f32.pop %v2333
      %v2366 = verf.f32.pop %v2334
      %v2367 = verf.f32.pop %v2335
      %v2368 = verf.f32.pop %v2336
      %v2369 = vadd.f32 %v2337, 1.0
      %v2370 = vadd.f32 %v2338, 1.0
      %v2371 = vadd.f32 %v2339, 1.0
      %v2372 = vadd.f32 %v2340, 1.0
      %v2373 = vadd.f32 %v2341, 1.0
      %v2374 = vadd.f32 %v2342, 1.0
      %v2375 = vadd.f32 %v2343, 1.0
      %v2376 = vadd.f32 %v2344, 1.0
      %v2377 = vadd.f32 %v2345, 1.0
      %v2378 = vadd.f32 %v2346, 1.0
      %v2379 = vadd.f32 %v2347, 1.0
      %v2380 = vadd.f32 %v2348, 1.0
      %v2381 = vadd.f32 %v2349, 1.0
      %v2382 = vadd.f32 %v2350, 1.0
      %v2383 = vadd.f32 %v2351, 1.0
      %v2384 = vadd.f32 %v2352, 1.0
      %v2385 = vadd.f32 %v2353, 1.0
      %v2386 = vadd.f32 %v2354, 1.0
      %v2387 = vadd.f32 %v2355, 1.0
      %v2388 = vadd.f32 %v2356, 1.0
      %v2389 = vadd.f32 %v2357, 1.0
      %v2390 = vadd.f32 %v2358, 1.0
      %v2391 = vadd.f32 %v2359, 1.0
      %v2392 = vadd.f32 %v2360, 1.0
      %v2393 = vadd.f32 %v2361, 1.0
      %v2394 = vadd.f32 %v2362, 1.0
      %v2395 = vadd.f32 %v2363, 1.0
      %v2396 = vadd.f32 %v2364, 1.0
      %v2397 = vadd.f32 %v2365, 1.0
      %v2398 = vadd.f32 %v2366, 1.0
      %v2399 = vadd.f32 %v2367, 1.0
      %v2400 = vadd.f32 %v2368, 1.0
      %v2401 = vmul.f32 %v2273, %v2369
      %v2402 = vmul.f32 %v2274, %v2370
      %v2403 = vmul.f32 %v2275, %v2371
      %v2404 = vmul.f32 %v2276, %v2372
      %v2405 = vmul.f32 %v2277, %v2373
      %v2406 = vmul.f32 %v2278, %v2374
      %v2407 = vmul.f32 %v2279, %v2375
      %v2408 = vmul.f32 %v2280, %v2376
      %v2409 = vmul.f32 %v2281, %v2377
      %v2410 = vmul.f32 %v2282, %v2378
      %v2411 = vmul.f32 %v2283, %v2379
      %v2412 = vmul.f32 %v2284, %v2380
      %v2413 = vmul.f32 %v2285, %v2381
      %v2414 = vmul.f32 %v2286, %v2382
      %v2415 = vmul.f32 %v2287, %v2383
      %v2416 = vmul.f32 %v2288, %v2384
      %v2417 = vmul.f32 %v2289, %v2385
      %v2418 = vmul.f32 %v2290, %v2386
      %v2419 = vmul.f32 %v2291, %v2387
      %v2420 = vmul.f32 %v2292, %v2388
      %v2421 = vmul.f32 %v2293, %v2389
      %v2422 = vmul.f32 %v2294, %v2390
      %v2423 = vmul.f32 %v2295, %v2391
      %v2424 = vmul.f32 %v2296, %v2392
      %v2425 = vmul.f32 %v2297, %v2393
      %v2426 = vmul.f32 %v2298, %v2394
      %v2427 = vmul.f32 %v2299, %v2395
      %v2428 = vmul.f32 %v2300, %v2396
      %v2429 = vmul.f32 %v2301, %v2397
      %v2430 = vmul.f32 %v2302, %v2398
      %v2431 = vmul.f32 %v2303, %v2399
      %v2432 = vmul.f32 %v2304, %v2400
      %v2433 = vpack.c.bf16 %v2402, %v2401
      %v2434 = vpack.c.bf16 %v2404, %v2403
      %v2435 = vpack.c.bf16 %v2406, %v2405
      %v2436 = vpack.c.bf16 %v2408, %v2407
      %v2437 = vpack.c.bf16 %v2410, %v2409
      %v2438 = vpack.c.bf16 %v2412, %v2411
      %v2439 = vpack.c.bf16 %v2414, %v2413
      %v2440 = vpack.c.bf16 %v2416, %v2415
      %v2441 = vpack.c.bf16 %v2418, %v2417
      %v2442 = vpack.c.bf16 %v2420, %v2419
      %v2443 = vpack.c.bf16 %v2422, %v2421
      %v2444 = vpack.c.bf16 %v2424, %v2423
      %v2445 = vpack.c.bf16 %v2426, %v2425
      %v2446 = vpack.c.bf16 %v2428, %v2427
      %v2447 = vpack.c.bf16 %v2430, %v2429
      %v2448 = vpack.c.bf16 %v2432, %v2431
      %s2449 = scalar_lea.vmem %s5, 64
      %v2450 = vld [vmem:[%s2449] sm:$0xf]
      %v2451 = vld [vmem:[%s2449 + $0x4] sm:$0xf]
      %v2452 = vld [vmem:[%s2449 + $0x8] sm:$0xf]
      %v2453 = vld [vmem:[%s2449 + $0xc] sm:$0xf]
      %v2454 = vld [vmem:[%s2449 + $0x10] sm:$0xf]
      %v2455 = vld [vmem:[%s2449 + $0x14] sm:$0xf]
      %v2456 = vld [vmem:[%s2449 + $0x18] sm:$0xf]
      %v2457 = vld [vmem:[%s2449 + $0x1c] sm:$0xf]
      %v2458 = vld [vmem:[%s2449 + $0x20] sm:$0xf]
      %v2459 = vld [vmem:[%s2449 + $0x24] sm:$0xf]
      %v2460 = vld [vmem:[%s2449 + $0x28] sm:$0xf]
      %v2461 = vld [vmem:[%s2449 + $0x2c] sm:$0xf]
      %v2462 = vld [vmem:[%s2449 + $0x30] sm:$0xf]
      %v2463 = vld [vmem:[%s2449 + $0x34] sm:$0xf]
      %v2464 = vld [vmem:[%s2449 + $0x38] sm:$0xf]
      %v2465 = vld [vmem:[%s2449 + $0x3c] sm:$0xf]
      %s2466 = scalar_lea.vmem %s6, 1
      %v2467 = vld [vmem:[%s2466] sm:$0x1]
      %v2469 = vlaneseq
      %v2470 = vshrl.u32 %v2469, 7
      %v2471 = vsub.s32 0, %v2470
      %v2472 = vrot.slane %v2467, %v2471
      %v2490 = vunpack.c.l.b16 %v2450
      %v2491 = vunpack.c.l.b16 %v2451
      %v2492 = vunpack.c.l.b16 %v2452
      %v2493 = vunpack.c.l.b16 %v2453
      %v2494 = vunpack.c.l.b16 %v2454
      %v2495 = vunpack.c.l.b16 %v2455
      %v2496 = vunpack.c.l.b16 %v2456
      %v2497 = vunpack.c.l.b16 %v2457
      %v2498 = vunpack.c.l.b16 %v2458
      %v2499 = vunpack.c.l.b16 %v2459
      %v2500 = vunpack.c.l.b16 %v2460
      %v2501 = vunpack.c.l.b16 %v2461
      %v2502 = vunpack.c.l.b16 %v2462
      %v2503 = vunpack.c.l.b16 %v2463
      %v2504 = vunpack.c.l.b16 %v2464
      %v2505 = vunpack.c.l.b16 %v2465
      %v2506 = vpack.c.b16 %v2491, %v2490
      %v2507 = vpack.c.b16 %v2493, %v2492
      %v2508 = vpack.c.b16 %v2495, %v2494
      %v2509 = vpack.c.b16 %v2497, %v2496
      %v2510 = vpack.c.b16 %v2499, %v2498
      %v2511 = vpack.c.b16 %v2501, %v2500
      %v2512 = vpack.c.b16 %v2503, %v2502
      %v2513 = vpack.c.b16 %v2505, %v2504
      %2522 = vmatprep.subr.bf16.mxu0 0
      %2523 = vmatpush1.bf16.msra.mxu0 %v2513
      %2524 = vmatprep.subr.bf16.mxu0 0
      %2525 = vmatpush1.bf16.msra.mxu0 %v2512
      %2526 = vmatprep.subr.bf16.mxu0 0
      %2527 = vmatpush1.bf16.msra.mxu0 %v2511
      %2528 = vmatprep.subr.bf16.mxu0 0
      %2529 = vmatpush1.bf16.msra.mxu0 %v2510
      %2530 = vmatprep.subr.bf16.mxu0 0
      %2531 = vmatpush1.bf16.msra.mxu0 %v2509
      %2532 = vmatprep.subr.bf16.mxu0 0
      %2533 = vmatpush1.bf16.msra.mxu0 %v2508
      %2534 = vmatprep.subr.bf16.mxu0 0
      %2535 = vmatpush1.bf16.msra.mxu0 %v2507
      %2536 = vmatprep.subr.bf16.mxu0 0
      %2537 = vmatpush1.bf16.msra.mxu0 %v2506
      %2538 = vmatprep.subr.bf16.mxu0 0
      %2539 = vmatpush2.bf16.msra.mxu0 0
      %2540 = vmatprep.subr.bf16.mxu0 0
      %2541 = vmatpush2.bf16.msra.mxu0 0
      %2542 = vmatprep.subr.bf16.mxu0 0
      %2543 = vmatpush2.bf16.msra.mxu0 0
      %2544 = vmatprep.subr.bf16.mxu0 0
      %2545 = vmatpush2.bf16.msra.mxu0 0
      %2546 = vmatprep.subr.bf16.mxu0 0
      %2547 = vmatpush2.bf16.msra.mxu0 0
      %2548 = vmatprep.subr.bf16.mxu0 0
      %2549 = vmatpush2.bf16.msra.mxu0 0
      %2550 = vmatprep.subr.bf16.mxu0 0
      %2551 = vmatpush2.bf16.msra.mxu0 0
      %2552 = vmatprep.subr.bf16.mxu0 0
      %2553 = vmatpush2.bf16.msra.mxu0 0
      %2554 = vmatprep.mubr.bf16.mxu0 0
      %2555 = vmatmul.mubr.bf16.gmra.mxu0 %v2433
      %v2556 = vpop.f32.mrf.mxu0
      %v2557 = vadd.f32 %v2472, %v2556
      %v2558 = vpop.f32.mrf.mxu0
      %v2559 = vpop.f32.mrf.mxu0
      %v2560 = vadd.f32 %v2472, %v2559
      %v2561 = vpop.f32.mrf.mxu0
      %2562 = vmatprep.mubr.bf16.mxu0 0
      %2563 = vmatmul.mubr.bf16.gmra.mxu0 %v2434
      %v2564 = vpop.f32.mrf.mxu0
      %v2565 = vadd.f32 %v2472, %v2564
      %v2566 = vpop.f32.mrf.mxu0
      %v2567 = vpop.f32.mrf.mxu0
      %v2568 = vadd.f32 %v2472, %v2567
      %v2569 = vpop.f32.mrf.mxu0
      %2570 = vmatprep.mubr.bf16.mxu0 0
      %2571 = vmatmul.mubr.bf16.gmra.mxu0 %v2435
      %v2572 = vpop.f32.mrf.mxu0
      %v2573 = vadd.f32 %v2472, %v2572
      %v2574 = vpop.f32.mrf.mxu0
      %v2575 = vpop.f32.mrf.mxu0
      %v2576 = vadd.f32 %v2472, %v2575
      %v2577 = vpop.f32.mrf.mxu0
      %2578 = vmatprep.mubr.bf16.mxu0 0
      %2579 = vmatmul.mubr.bf16.gmra.mxu0 %v2436
      %v2580 = vpop.f32.mrf.mxu0
      %v2581 = vadd.f32 %v2472, %v2580
      %v2582 = vpop.f32.mrf.mxu0
      %v2583 = vpop.f32.mrf.mxu0
      %v2584 = vadd.f32 %v2472, %v2583
      %v2585 = vpop.f32.mrf.mxu0
      %2586 = vmatprep.mubr.bf16.mxu0 0
      %2587 = vmatmul.mubr.bf16.gmra.mxu0 %v2437
      %v2588 = vpop.f32.mrf.mxu0
      %v2589 = vadd.f32 %v2472, %v2588
      %v2590 = vpop.f32.mrf.mxu0
      %v2591 = vpop.f32.mrf.mxu0
      %v2592 = vadd.f32 %v2472, %v2591
      %v2593 = vpop.f32.mrf.mxu0
      %2594 = vmatprep.mubr.bf16.mxu0 0
      %2595 = vmatmul.mubr.bf16.gmra.mxu0 %v2438
      %v2596 = vpop.f32.mrf.mxu0
      %v2597 = vadd.f32 %v2472, %v2596
      %v2598 = vpop.f32.mrf.mxu0
      %v2599 = vpop.f32.mrf.mxu0
      %v2600 = vadd.f32 %v2472, %v2599
      %v2601 = vpop.f32.mrf.mxu0
      %2602 = vmatprep.mubr.bf16.mxu0 0
      %2603 = vmatmul.mubr.bf16.gmra.mxu0 %v2439
      %v2604 = vpop.f32.mrf.mxu0
      %v2605 = vadd.f32 %v2472, %v2604
      %v2606 = vpop.f32.mrf.mxu0
      %v2607 = vpop.f32.mrf.mxu0
      %v2608 = vadd.f32 %v2472, %v2607
      %v2609 = vpop.f32.mrf.mxu0
      %2610 = vmatprep.mubr.bf16.mxu0 0
      %2611 = vmatmul.mubr.bf16.gmra.mxu0 %v2440
      %v2612 = vpop.f32.mrf.mxu0
      %v2613 = vadd.f32 %v2472, %v2612
      %v2614 = vpop.f32.mrf.mxu0
      %v2615 = vpop.f32.mrf.mxu0
      %v2616 = vadd.f32 %v2472, %v2615
      %v2617 = vpop.f32.mrf.mxu0
      %2618 = vmatprep.mubr.bf16.mxu0 0
      %2619 = vmatmul.mubr.bf16.gmra.mxu0 %v2441
      %v2620 = vpop.f32.mrf.mxu0
      %v2621 = vadd.f32 %v2472, %v2620
      %v2622 = vpop.f32.mrf.mxu0
      %v2623 = vpop.f32.mrf.mxu0
      %v2624 = vadd.f32 %v2472, %v2623
      %v2625 = vpop.f32.mrf.mxu0
      %2626 = vmatprep.mubr.bf16.mxu0 0
      %2627 = vmatmul.mubr.bf16.gmra.mxu0 %v2442
      %v2628 = vpop.f32.mrf.mxu0
      %v2629 = vadd.f32 %v2472, %v2628
      %v2630 = vpop.f32.mrf.mxu0
      %v2631 = vpop.f32.mrf.mxu0
      %v2632 = vadd.f32 %v2472, %v2631
      %v2633 = vpop.f32.mrf.mxu0
      %2634 = vmatprep.mubr.bf16.mxu0 0
      %2635 = vmatmul.mubr.bf16.gmra.mxu0 %v2443
      %v2636 = vpop.f32.mrf.mxu0
      %v2637 = vadd.f32 %v2472, %v2636
      %v2638 = vpop.f32.mrf.mxu0
      %v2639 = vpop.f32.mrf.mxu0
      %v2640 = vadd.f32 %v2472, %v2639
      %v2641 = vpop.f32.mrf.mxu0
      %2642 = vmatprep.mubr.bf16.mxu0 0
      %2643 = vmatmul.mubr.bf16.gmra.mxu0 %v2444
      %v2644 = vpop.f32.mrf.mxu0
      %v2645 = vadd.f32 %v2472, %v2644
      %v2646 = vpop.f32.mrf.mxu0
      %v2647 = vpop.f32.mrf.mxu0
      %v2648 = vadd.f32 %v2472, %v2647
      %v2649 = vpop.f32.mrf.mxu0
      %2650 = vmatprep.mubr.bf16.mxu0 0
      %2651 = vmatmul.mubr.bf16.gmra.mxu0 %v2445
      %v2652 = vpop.f32.mrf.mxu0
      %v2653 = vadd.f32 %v2472, %v2652
      %v2654 = vpop.f32.mrf.mxu0
      %v2655 = vpop.f32.mrf.mxu0
      %v2656 = vadd.f32 %v2472, %v2655
      %v2657 = vpop.f32.mrf.mxu0
      %2658 = vmatprep.mubr.bf16.mxu0 0
      %2659 = vmatmul.mubr.bf16.gmra.mxu0 %v2446
      %v2660 = vpop.f32.mrf.mxu0
      %v2661 = vadd.f32 %v2472, %v2660
      %v2662 = vpop.f32.mrf.mxu0
      %v2663 = vpop.f32.mrf.mxu0
      %v2664 = vadd.f32 %v2472, %v2663
      %v2665 = vpop.f32.mrf.mxu0
      %2666 = vmatprep.mubr.bf16.mxu0 0
      %2667 = vmatmul.mubr.bf16.gmra.mxu0 %v2447
      %v2668 = vpop.f32.mrf.mxu0
      %v2669 = vadd.f32 %v2472, %v2668
      %v2670 = vpop.f32.mrf.mxu0
      %v2671 = vpop.f32.mrf.mxu0
      %v2672 = vadd.f32 %v2472, %v2671
      %v2673 = vpop.f32.mrf.mxu0
      %2674 = vmatprep.mubr.bf16.mxu0 0
      %2675 = vmatmul.mubr.bf16.gmra.mxu0 %v2448
      %v2676 = vpop.f32.mrf.mxu0
      %v2677 = vadd.f32 %v2472, %v2676
      %v2678 = vpop.f32.mrf.mxu0
      %v2679 = vpop.f32.mrf.mxu0
      %v2680 = vadd.f32 %v2472, %v2679
      %v2681 = vpop.f32.mrf.mxu0
      %2682 = vdwg.mxu0
      %v2683 = vmul.f32 %v2557, 1.442695
      %v2684 = vpow.pop %v2683
      %v2685 = vmul.f32 %v2560, 1.442695
      %v2686 = vpow.pop %v2685
      %v2687 = vmul.f32 %v2565, 1.442695
      %v2688 = vpow.pop %v2687
      %v2689 = vmul.f32 %v2568, 1.442695
      %v2690 = vpow.pop %v2689
      %v2691 = vmul.f32 %v2573, 1.442695
      %v2692 = vpow.pop %v2691
      %v2693 = vmul.f32 %v2576, 1.442695
      %v2694 = vpow.pop %v2693
      %v2695 = vmul.f32 %v2581, 1.442695
      %v2696 = vpow.pop %v2695
      %v2697 = vmul.f32 %v2584, 1.442695
      %v2698 = vpow.pop %v2697
      %v2699 = vmul.f32 %v2589, 1.442695
      %v2700 = vpow.pop %v2699
      %v2701 = vmul.f32 %v2592, 1.442695
      %v2702 = vpow.pop %v2701
      %v2703 = vmul.f32 %v2597, 1.442695
      %v2704 = vpow.pop %v2703
      %v2705 = vmul.f32 %v2600, 1.442695
      %v2706 = vpow.pop %v2705
      %v2707 = vmul.f32 %v2605, 1.442695
      %v2708 = vpow.pop %v2707
      %v2709 = vmul.f32 %v2608, 1.442695
      %v2710 = vpow.pop %v2709
      %v2711 = vmul.f32 %v2613, 1.442695
      %v2712 = vpow.pop %v2711
      %v2713 = vmul.f32 %v2616, 1.442695
      %v2714 = vpow.pop %v2713
      %v2715 = vmul.f32 %v2621, 1.442695
      %v2716 = vpow.pop %v2715
      %v2717 = vmul.f32 %v2624, 1.442695
      %v2718 = vpow.pop %v2717
      %v2719 = vmul.f32 %v2629, 1.442695
      %v2720 = vpow.pop %v2719
      %v2721 = vmul.f32 %v2632, 1.442695
      %v2722 = vpow.pop %v2721
      %v2723 = vmul.f32 %v2637, 1.442695
      %v2724 = vpow.pop %v2723
      %v2725 = vmul.f32 %v2640, 1.442695
      %v2726 = vpow.pop %v2725
      %v2727 = vmul.f32 %v2645, 1.442695
      %v2728 = vpow.pop %v2727
      %v2729 = vmul.f32 %v2648, 1.442695
      %v2730 = vpow.pop %v2729
      %v2731 = vmul.f32 %v2653, 1.442695
      %v2732 = vpow.pop %v2731
      %v2733 = vmul.f32 %v2656, 1.442695
      %v2734 = vpow.pop %v2733
      %v2735 = vmul.f32 %v2661, 1.442695
      %v2736 = vpow.pop %v2735
      %v2737 = vmul.f32 %v2664, 1.442695
      %v2738 = vpow.pop %v2737
      %v2739 = vmul.f32 %v2669, 1.442695
      %v2740 = vpow.pop %v2739
      %v2741 = vmul.f32 %v2672, 1.442695
      %v2742 = vpow.pop %v2741
      %v2743 = vmul.f32 %v2677, 1.442695
      %v2744 = vpow.pop %v2743
      %v2745 = vmul.f32 %v2680, 1.442695
      %v2746 = vpow.pop %v2745
      %2779 = vrot.lane.b32.xlu0 %v2684, 120
      %v2780 = vpop.permute.xlu0 %2779
      %2781 = vrot.lane.b32.xlu0 %v2686, 120
      %v2782 = vpop.permute.xlu0 %2781
      %2783 = vrot.lane.b32.xlu0 %v2688, 120
      %v2784 = vpop.permute.xlu0 %2783
      %2785 = vrot.lane.b32.xlu0 %v2690, 120
      %v2786 = vpop.permute.xlu0 %2785
      %2787 = vrot.lane.b32.xlu0 %v2692, 120
      %v2788 = vpop.permute.xlu0 %2787
      %2789 = vrot.lane.b32.xlu0 %v2694, 120
      %v2790 = vpop.permute.xlu0 %2789
      %2791 = vrot.lane.b32.xlu0 %v2696, 120
      %v2792 = vpop.permute.xlu0 %2791
      %2793 = vrot.lane.b32.xlu0 %v2698, 120
      %v2794 = vpop.permute.xlu0 %2793
      %2795 = vrot.lane.b32.xlu0 %v2700, 120
      %v2796 = vpop.permute.xlu0 %2795
      %2797 = vrot.lane.b32.xlu0 %v2702, 120
      %v2798 = vpop.permute.xlu0 %2797
      %2799 = vrot.lane.b32.xlu0 %v2704, 120
      %v2800 = vpop.permute.xlu0 %2799
      %2801 = vrot.lane.b32.xlu0 %v2706, 120
      %v2802 = vpop.permute.xlu0 %2801
      %2803 = vrot.lane.b32.xlu0 %v2708, 120
      %v2804 = vpop.permute.xlu0 %2803
      %2805 = vrot.lane.b32.xlu0 %v2710, 120
      %v2806 = vpop.permute.xlu0 %2805
      %2807 = vrot.lane.b32.xlu0 %v2712, 120
      %v2808 = vpop.permute.xlu0 %2807
      %2809 = vrot.lane.b32.xlu0 %v2714, 120
      %v2810 = vpop.permute.xlu0 %2809
      %2811 = vrot.lane.b32.xlu0 %v2716, 120
      %v2812 = vpop.permute.xlu0 %2811
      %2813 = vrot.lane.b32.xlu0 %v2718, 120
      %v2814 = vpop.permute.xlu0 %2813
      %2815 = vrot.lane.b32.xlu0 %v2720, 120
      %v2816 = vpop.permute.xlu0 %2815
      %2817 = vrot.lane.b32.xlu0 %v2722, 120
      %v2818 = vpop.permute.xlu0 %2817
      %2819 = vrot.lane.b32.xlu0 %v2724, 120
      %v2820 = vpop.permute.xlu0 %2819
      %2821 = vrot.lane.b32.xlu0 %v2726, 120
      %v2822 = vpop.permute.xlu0 %2821
      %2823 = vrot.lane.b32.xlu0 %v2728, 120
      %v2824 = vpop.permute.xlu0 %2823
      %2825 = vrot.lane.b32.xlu0 %v2730, 120
      %v2826 = vpop.permute.xlu0 %2825
      %2827 = vrot.lane.b32.xlu0 %v2732, 120
      %v2828 = vpop.permute.xlu0 %2827
      %2829 = vrot.lane.b32.xlu0 %v2734, 120
      %v2830 = vpop.permute.xlu0 %2829
      %2831 = vrot.lane.b32.xlu0 %v2736, 120
      %v2832 = vpop.permute.xlu0 %2831
      %2833 = vrot.lane.b32.xlu0 %v2738, 120
      %v2834 = vpop.permute.xlu0 %2833
      %2835 = vrot.lane.b32.xlu0 %v2740, 120
      %v2836 = vpop.permute.xlu0 %2835
      %2837 = vrot.lane.b32.xlu0 %v2742, 120
      %v2838 = vpop.permute.xlu0 %2837
      %2839 = vrot.lane.b32.xlu0 %v2744, 120
      %v2840 = vpop.permute.xlu0 %2839
      %2841 = vrot.lane.b32.xlu0 %v2746, 120
      %v2842 = vpop.permute.xlu0 %2841
      %v2875 = vmul.f32 %v283, %v2780
      %v2876 = vmul.f32 %v284, %v2782
      %v2877 = vmul.f32 %v285, %v2784
      %v2878 = vmul.f32 %v286, %v2786
      %v2879 = vmul.f32 %v287, %v2788
      %v2880 = vmul.f32 %v288, %v2790
      %v2881 = vmul.f32 %v289, %v2792
      %v2882 = vmul.f32 %v290, %v2794
      %v2883 = vmul.f32 %v291, %v2796
      %v2884 = vmul.f32 %v292, %v2798
      %v2885 = vmul.f32 %v293, %v2800
      %v2886 = vmul.f32 %v294, %v2802
      %v2887 = vmul.f32 %v295, %v2804
      %v2888 = vmul.f32 %v296, %v2806
      %v2889 = vmul.f32 %v297, %v2808
      %v2890 = vmul.f32 %v298, %v2810
      %v2891 = vmul.f32 %v299, %v2812
      %v2892 = vmul.f32 %v300, %v2814
      %v2893 = vmul.f32 %v301, %v2816
      %v2894 = vmul.f32 %v302, %v2818
      %v2895 = vmul.f32 %v303, %v2820
      %v2896 = vmul.f32 %v304, %v2822
      %v2897 = vmul.f32 %v305, %v2824
      %v2898 = vmul.f32 %v306, %v2826
      %v2899 = vmul.f32 %v307, %v2828
      %v2900 = vmul.f32 %v308, %v2830
      %v2901 = vmul.f32 %v309, %v2832
      %v2902 = vmul.f32 %v310, %v2834
      %v2903 = vmul.f32 %v311, %v2836
      %v2904 = vmul.f32 %v312, %v2838
      %v2905 = vmul.f32 %v313, %v2840
      %v2906 = vmul.f32 %v314, %v2842
      %v2907 = vadd.f32 %v2557, %v2875
      %v2908 = vadd.f32 %v2560, %v2876
      %v2909 = vadd.f32 %v2565, %v2877
      %v2910 = vadd.f32 %v2568, %v2878
      %v2911 = vadd.f32 %v2573, %v2879
      %v2912 = vadd.f32 %v2576, %v2880
      %v2913 = vadd.f32 %v2581, %v2881
      %v2914 = vadd.f32 %v2584, %v2882
      %v2915 = vadd.f32 %v2589, %v2883
      %v2916 = vadd.f32 %v2592, %v2884
      %v2917 = vadd.f32 %v2597, %v2885
      %v2918 = vadd.f32 %v2600, %v2886
      %v2919 = vadd.f32 %v2605, %v2887
      %v2920 = vadd.f32 %v2608, %v2888
      %v2921 = vadd.f32 %v2613, %v2889
      %v2922 = vadd.f32 %v2616, %v2890
      %v2923 = vadd.f32 %v2621, %v2891
      %v2924 = vadd.f32 %v2624, %v2892
      %v2925 = vadd.f32 %v2629, %v2893
      %v2926 = vadd.f32 %v2632, %v2894
      %v2927 = vadd.f32 %v2637, %v2895
      %v2928 = vadd.f32 %v2640, %v2896
      %v2929 = vadd.f32 %v2645, %v2897
      %v2930 = vadd.f32 %v2648, %v2898
      %v2931 = vadd.f32 %v2653, %v2899
      %v2932 = vadd.f32 %v2656, %v2900
      %v2933 = vadd.f32 %v2661, %v2901
      %v2934 = vadd.f32 %v2664, %v2902
      %v2935 = vadd.f32 %v2669, %v2903
      %v2936 = vadd.f32 %v2672, %v2904
      %v2937 = vadd.f32 %v2677, %v2905
      %v2938 = vadd.f32 %v2680, %v2906
      %2971 = vrot.lane.b32.xlu0 %v1593, 8
      %v2972 = vpop.permute.xlu0 %2971
      %2973 = vrot.lane.b32.xlu0 %v1594, 8
      %v2974 = vpop.permute.xlu0 %2973
      %2975 = vrot.lane.b32.xlu0 %v1595, 8
      %v2976 = vpop.permute.xlu0 %2975
      %2977 = vrot.lane.b32.xlu0 %v1596, 8
      %v2978 = vpop.permute.xlu0 %2977
      %2979 = vrot.lane.b32.xlu0 %v1597, 8
      %v2980 = vpop.permute.xlu0 %2979
      %2981 = vrot.lane.b32.xlu0 %v1598, 8
      %v2982 = vpop.permute.xlu0 %2981
      %2983 = vrot.lane.b32.xlu0 %v1599, 8
      %v2984 = vpop.permute.xlu0 %2983
      %2985 = vrot.lane.b32.xlu0 %v1600, 8
      %v2986 = vpop.permute.xlu0 %2985
      %2987 = vrot.lane.b32.xlu0 %v1601, 8
      %v2988 = vpop.permute.xlu0 %2987
      %2989 = vrot.lane.b32.xlu0 %v1602, 8
      %v2990 = vpop.permute.xlu0 %2989
      %2991 = vrot.lane.b32.xlu0 %v1603, 8
      %v2992 = vpop.permute.xlu0 %2991
      %2993 = vrot.lane.b32.xlu0 %v1604, 8
      %v2994 = vpop.permute.xlu0 %2993
      %2995 = vrot.lane.b32.xlu0 %v1605, 8
      %v2996 = vpop.permute.xlu0 %2995
      %2997 = vrot.lane.b32.xlu0 %v1606, 8
      %v2998 = vpop.permute.xlu0 %2997
      %2999 = vrot.lane.b32.xlu0 %v1607, 8
      %v3000 = vpop.permute.xlu0 %2999
      %3001 = vrot.lane.b32.xlu0 %v1608, 8
      %v3002 = vpop.permute.xlu0 %3001
      %3003 = vrot.lane.b32.xlu0 %v1609, 8
      %v3004 = vpop.permute.xlu0 %3003
      %3005 = vrot.lane.b32.xlu0 %v1610, 8
      %v3006 = vpop.permute.xlu0 %3005
      %3007 = vrot.lane.b32.xlu0 %v1611, 8
      %v3008 = vpop.permute.xlu0 %3007
      %3009 = vrot.lane.b32.xlu0 %v1612, 8
      %v3010 = vpop.permute.xlu0 %3009
      %3011 = vrot.lane.b32.xlu0 %v1613, 8
      %v3012 = vpop.permute.xlu0 %3011
      %3013 = vrot.lane.b32.xlu0 %v1614, 8
      %v3014 = vpop.permute.xlu0 %3013
      %3015 = vrot.lane.b32.xlu0 %v1615, 8
      %v3016 = vpop.permute.xlu0 %3015
      %3017 = vrot.lane.b32.xlu0 %v1616, 8
      %v3018 = vpop.permute.xlu0 %3017
      %3019 = vrot.lane.b32.xlu0 %v1617, 8
      %v3020 = vpop.permute.xlu0 %3019
      %3021 = vrot.lane.b32.xlu0 %v1618, 8
      %v3022 = vpop.permute.xlu0 %3021
      %3023 = vrot.lane.b32.xlu0 %v1619, 8
      %v3024 = vpop.permute.xlu0 %3023
      %3025 = vrot.lane.b32.xlu0 %v1620, 8
      %v3026 = vpop.permute.xlu0 %3025
      %3027 = vrot.lane.b32.xlu0 %v1621, 8
      %v3028 = vpop.permute.xlu0 %3027
      %3029 = vrot.lane.b32.xlu0 %v1622, 8
      %v3030 = vpop.permute.xlu0 %3029
      %3031 = vrot.lane.b32.xlu0 %v1623, 8
      %v3032 = vpop.permute.xlu0 %3031
      %3033 = vrot.lane.b32.xlu0 %v1624, 8
      %v3034 = vpop.permute.xlu0 %3033
      %v3067 = vsel %vm339, %v2907, %v2972
      %v3068 = vsel %vm339, %v2908, %v2974
      %v3069 = vsel %vm339, %v2909, %v2976
      %v3070 = vsel %vm339, %v2910, %v2978
      %v3071 = vsel %vm339, %v2911, %v2980
      %v3072 = vsel %vm339, %v2912, %v2982
      %v3073 = vsel %vm339, %v2913, %v2984
      %v3074 = vsel %vm339, %v2914, %v2986
      %v3075 = vsel %vm339, %v2915, %v2988
      %v3076 = vsel %vm339, %v2916, %v2990
      %v3077 = vsel %vm339, %v2917, %v2992
      %v3078 = vsel %vm339, %v2918, %v2994
      %v3079 = vsel %vm339, %v2919, %v2996
      %v3080 = vsel %vm339, %v2920, %v2998
      %v3081 = vsel %vm339, %v2921, %v3000
      %v3082 = vsel %vm339, %v2922, %v3002
      %v3083 = vsel %vm339, %v2923, %v3004
      %v3084 = vsel %vm339, %v2924, %v3006
      %v3085 = vsel %vm339, %v2925, %v3008
      %v3086 = vsel %vm339, %v2926, %v3010
      %v3087 = vsel %vm339, %v2927, %v3012
      %v3088 = vsel %vm339, %v2928, %v3014
      %v3089 = vsel %vm339, %v2929, %v3016
      %v3090 = vsel %vm339, %v2930, %v3018
      %v3091 = vsel %vm339, %v2931, %v3020
      %v3092 = vsel %vm339, %v2932, %v3022
      %v3093 = vsel %vm339, %v2933, %v3024
      %v3094 = vsel %vm339, %v2934, %v3026
      %v3095 = vsel %vm339, %v2935, %v3028
      %v3096 = vsel %vm339, %v2936, %v3030
      %v3097 = vsel %vm339, %v2937, %v3032
      %v3098 = vsel %vm339, %v2938, %v3034
      %vm3099 = vcmask 130048
      %3100 = vst.msk [vmem:[%s280] sm:$0xff] %vm3099, %v3067
      %3101 = vst.msk [vmem:[%s280 + $0x8] sm:$0xff] %vm3099, %v3068
      %3102 = vst.msk [vmem:[%s280 + $0x10] sm:$0xff] %vm3099, %v3069
      %3103 = vst.msk [vmem:[%s280 + $0x18] sm:$0xff] %vm3099, %v3070
      %3104 = vst.msk [vmem:[%s280 + $0x20] sm:$0xff] %vm3099, %v3071
      %3105 = vst.msk [vmem:[%s280 + $0x28] sm:$0xff] %vm3099, %v3072
      %3106 = vst.msk [vmem:[%s280 + $0x30] sm:$0xff] %vm3099, %v3073
      %3107 = vst.msk [vmem:[%s280 + $0x38] sm:$0xff] %vm3099, %v3074
      %3108 = vst.msk [vmem:[%s280 + $0x40] sm:$0xff] %vm3099, %v3075
      %3109 = vst.msk [vmem:[%s280 + $0x48] sm:$0xff] %vm3099, %v3076
      %3110 = vst.msk [vmem:[%s280 + $0x50] sm:$0xff] %vm3099, %v3077
      %3111 = vst.msk [vmem:[%s280 + $0x58] sm:$0xff] %vm3099, %v3078
      %3112 = vst.msk [vmem:[%s280 + $0x60] sm:$0xff] %vm3099, %v3079
      %3113 = vst.msk [vmem:[%s280 + $0x68] sm:$0xff] %vm3099, %v3080
      %3114 = vst.msk [vmem:[%s280 + $0x70] sm:$0xff] %vm3099, %v3081
      %3115 = vst.msk [vmem:[%s280 + $0x78] sm:$0xff] %vm3099, %v3082
      %3116 = vst.msk [vmem:[%s280 + $0x80] sm:$0xff] %vm3099, %v3083
      %3117 = vst.msk [vmem:[%s280 + $0x88] sm:$0xff] %vm3099, %v3084
      %3118 = vst.msk [vmem:[%s280 + $0x90] sm:$0xff] %vm3099, %v3085
      %3119 = vst.msk [vmem:[%s280 + $0x98] sm:$0xff] %vm3099, %v3086
      %3120 = vst.msk [vmem:[%s280 + $0xa0] sm:$0xff] %vm3099, %v3087
      %3121 = vst.msk [vmem:[%s280 + $0xa8] sm:$0xff] %vm3099, %v3088
      %3122 = vst.msk [vmem:[%s280 + $0xb0] sm:$0xff] %vm3099, %v3089
      %3123 = vst.msk [vmem:[%s280 + $0xb8] sm:$0xff] %vm3099, %v3090
      %3124 = vst.msk [vmem:[%s280 + $0xc0] sm:$0xff] %vm3099, %v3091
      %3125 = vst.msk [vmem:[%s280 + $0xc8] sm:$0xff] %vm3099, %v3092
      %3126 = vst.msk [vmem:[%s280 + $0xd0] sm:$0xff] %vm3099, %v3093
      %3127 = vst.msk [vmem:[%s280 + $0xd8] sm:$0xff] %vm3099, %v3094
      %3128 = vst.msk [vmem:[%s280 + $0xe0] sm:$0xff] %vm3099, %v3095
      %3129 = vst.msk [vmem:[%s280 + $0xe8] sm:$0xff] %vm3099, %v3096
      %3130 = vst.msk [vmem:[%s280 + $0xf0] sm:$0xff] %vm3099, %v3097
      %3131 = vst.msk [vmem:[%s280 + $0xf8] sm:$0xff] %vm3099, %v3098
      %s3132 = smul.u32 32, %s18
      %p3133 = scmp.lt.s32.totalorder %s3132, 63
      %s3134 = scalar_select %p3133, %s3132, 63
      %s3135 = smul.addr %s3134, 8
      %s3136 = scalar_lea.vmem %s7, %s3135
      // Predicated region
      $region49: #{tpu_custom_call.1} parent=47 // pred_check
        %p3137 = pneg %p188
      $region50: #{tpu_custom_call.1} parent=47 // pred_check_branch
        %3139 = sbr.rel (%p3137) target = $region52
      $region51: #{tpu_custom_call.1} parent=47 // pred_region
        %s3140 = smul.u32 32, %s18
      $region52: #{tpu_custom_call.1} parent=47 // pred_fallthru
        _
    $region48: #{tpu_custom_call.1} parent=5 // pred_fallthru
      _
    %p3141 = scmp.le.s32.totalorder 2, %s13
    // Predicated region
    $region53: #{tpu_custom_call.1} parent=5 // pred_check
      %p3142 = pneg %p3141
    $region54: #{tpu_custom_call.1} parent=5 // pred_check_branch
      %3144 = sbr.rel (%p3142) target = $region56
    $region55: #{tpu_custom_call.1} parent=5 // pred_region
      %s3145 = ssub.s32 %s13, 2
      // Predicated region
      $region57: #{tpu_custom_call.1} parent=55 // pred_check
        %p3146 = pneg %p194
      $region58: #{tpu_custom_call.1} parent=55 // pred_check_branch
        %3148 = sbr.rel (%p3146) target = $region60
      $region59: #{tpu_custom_call.1} parent=55 // pred_region
        %s3149 = smul.u32 32, %s19
        %p3150 = scmp.lt.s32.totalorder %s3149, 63
        %s3151 = scalar_select %p3150, %s3149, 63
        %s3152 = smul.addr %s3151, 8
        %s3153 = scalar_lea.vmem %s7, %s3152
      $region60: #{tpu_custom_call.1} parent=55 // pred_fallthru
        _
    $region56: #{tpu_custom_call.1} parent=5 // pred_fallthru
      _
  $region6: #{tpu_custom_call.1} parent=0 // loop_footer
    %s17 = sadd.s32 1, %s13
  $region7: #{tpu_custom_call.1} parent=0 // loop_footer_branch
    %12 = sbr.rel target = $region3
  $region8: #{tpu_custom_call.1} parent=0 // loop_exit
    _

</llo_original>
